<compile_context>
chip_gen: v7x
topology: tpu7x:2x2x1
jax: 0.10.0
libtpu: 0.0.40
codegen_flags: <defaults>
</compile_context>

<pallas_src>
import functools
import math

import jax
import jax.numpy as jnp
from jax.experimental import pallas as pl
from jax.experimental.pallas import tpu as pltpu


def _round_up(n, m):
    return ((n + m - 1) // m) * m


def _cdiv(a, b):
    return -(-a // b)


def rs_classifier_kernel(x_ref, w1_ref, b1_ref, w2_ref, b2_ref, y_ref, c_ref,
                         *, total_rows):
    # x_ref : (ROWS, LF_pad)  flattened sentences (f32), read from HBM exactly once
    # w1_ref: (LF_pad, Hp)    mean-pool fused + zero padded first Linear (f32 or bf16)
    # b1_ref: (1, Hp)         first bias (f32, zero padded)
    # w2_ref: (1, Hp)         second Linear as a row vector (f32, zero padded)
    # b2_ref: (1, 1) in SMEM  second bias (scalar)
    # y_ref : (ROWS, 1)       masked per-sentence prediction
    # c_ref : (ROWS, 1)       per-sentence nonzero flag (count_nonzero() > 0)
    x = x_ref[...]                                       # single load of the X tile
    rows = x.shape[0]

    # Nonzero-sentence mask from the original f32 data, AND a valid-row mask for the
    # grid tail (OOB block contents are undefined; do not trust them).
    nz = jnp.max(jnp.abs(x), axis=-1, keepdims=True) > 0.0          # (rows, 1)
    row0 = pl.program_id(0) * rows
    gidx = row0 + jax.lax.broadcasted_iota(jnp.int32, (rows, 1), 0)
    keep = jnp.logical_and(nz, gidx < total_rows)                    # (rows, 1)

    # Fused (token mean-pool + Linear1) on the MXU (bf16 path when W1 is bf16), ReLU.
    h = jnp.dot(x.astype(w1_ref.dtype), w1_ref[...],
                preferred_element_type=jnp.float32)
    h = jnp.maximum(h + b1_ref[...], 0.0)                            # (rows, Hp)

    # Linear2 (N=1) as a VPU/XLU lane reduce -> per-sentence prediction (rows, 1).
    y = jnp.sum(h * w2_ref[...], axis=-1, keepdims=True) + b2_ref[0, 0]

    y_ref[...] = jnp.where(keep, y, 0.0)                 # masked rows contribute 0
    c_ref[...] = keep.astype(jnp.float32)


def _choose_rows_per_tile(total_rows, lf_pad, itemsize=4, target_tile_bytes=8 << 20):
    """Pick a row tile: multi-MiB X blocks, multiple of 8 rows, ~even grid length."""
    target_rows = max(8, (target_tile_bytes // (lf_pad * itemsize)) // 8 * 8)
    rows_per_tile = min(_round_up(total_rows, 8), target_rows)
    num_tiles = _cdiv(total_rows, rows_per_tile)
    # Nudge to an even grid length so v7x's two TensorCores get equal work.
    if num_tiles > 1 and num_tiles % 2 == 1:
        alt = _round_up(_cdiv(total_rows, num_tiles + 1), 8)
        if alt >= 8 and _cdiv(total_rows, alt) % 2 == 0:
            rows_per_tile, num_tiles = alt, _cdiv(total_rows, alt)
    return rows_per_tile, num_tiles


def rs_classifier_predict(x, w1, b1, w2, b2, *, use_bf16_matmul=False,
                          target_tile_bytes=8 << 20):
    """_predict(X, subj_mean=True) with the stand-in head, as a tiled Pallas kernel."""
    B, S, L, F = x.shape
    H = w1.shape[1]
    f32 = jnp.float32

    LF = L * F
    LF_pad = _round_up(LF, 128)
    Hp = _round_up(H, 128)

    # --- weight prep (wrapper side, once) ---
    # Fuse the token mean-pool into W1:  mean(x, tokens) @ W1 == x_flat @ tile(W1,(L,1))/L
    w1_rep = jnp.tile(w1.astype(f32), (L, 1)) / float(L)                 # (L*F, H)
    w1_p = jnp.zeros((LF_pad, Hp), f32).at[:LF, :H].set(w1_rep)
    if use_bf16_matmul:
        # v5e: run the MXU in bf16 (X is cast in-kernel; mask always from f32 data).
        w1_p = w1_p.astype(jnp.bfloat16)
    b1_p = jnp.zeros((1, Hp), f32).at[:, :H].set(jnp.reshape(b1, (1, H)).astype(f32))
    w2_p = jnp.zeros((1, Hp), f32).at[:, :H].set(jnp.reshape(w2, (1, H)).astype(f32))
    b2_s = jnp.reshape(jnp.asarray(b2, f32), (1, 1))

    # --- input: flattened lane-dense view, NO padded copy of X ---
    x2d = x.reshape(B * S, LF).astype(f32)          # free row-major collapse for f32 x
    if LF_pad != LF:
        # TODO(synk): only taken when L*F is not lane-aligned; costs one extra X copy.
        x2d = jnp.pad(x2d, ((0, 0), (0, LF_pad - LF)))

    total_rows = B * S
    rows_per_tile, num_tiles = _choose_rows_per_tile(
        total_rows, LF_pad, target_tile_bytes=target_tile_bytes)
    out_rows = num_tiles * rows_per_tile

    # VMEM budget (v7x physical = 64 MiB): double-buffered X tile + resident weights +
    # the h intermediate + narrow outputs, with headroom.
    w_itemsize = 2 if use_bf16_matmul else 4
    per_step_bytes = (2 * rows_per_tile * LF_pad * 4            # X double buffer
                      + LF_pad * Hp * w_itemsize + 2 * Hp * 4   # weights / biases
                      + rows_per_tile * Hp * 4                  # h intermediate
                      + 4 * rows_per_tile * 4)                  # y / count blocks
    assert per_step_bytes < 48 * 1024 * 1024, per_step_bytes
    vmem_limit = int(min(56 * 1024 * 1024,
                         max(32 * 1024 * 1024, per_step_bytes + per_step_bytes // 2)))

    cost = pl.CostEstimate(
        flops=int(2 * total_rows * LF_pad * Hp + 6 * total_rows * Hp),
        transcendentals=0,
        bytes_accessed=int(x2d.size * 4 + w1_p.size * w_itemsize
                           + (b1_p.size + w2_p.size + 1) * 4 + 2 * out_rows * 4),
    )

    kernel = functools.partial(rs_classifier_kernel, total_rows=total_rows)

    def build_call(single_buffer_weights):
        def const_spec(shape):
            if single_buffer_weights:
                # Constant index_map -> double-buffering these just wastes VMEM.
                return pl.BlockSpec(shape, lambda i: (0, 0),
                                    pipeline_mode=pl.Buffered(1))
            return pl.BlockSpec(shape, lambda i: (0, 0))

        return pl.pallas_call(
            kernel,
            out_shape=(jax.ShapeDtypeStruct((out_rows, 1), f32),   # per-sentence y
                       jax.ShapeDtypeStruct((out_rows, 1), f32)),  # per-sentence keep
            grid=(num_tiles,),
            in_specs=[
                pl.BlockSpec((rows_per_tile, LF_pad), lambda i: (i, 0)),  # X (pipelined)
                const_spec((LF_pad, Hp)),                                 # W1 (resident)
                const_spec((1, Hp)),                                      # b1
                const_spec((1, Hp)),                                      # w2 row
                pl.BlockSpec(memory_space=pltpu.MemorySpace.SMEM),        # b2 scalar
            ],
            out_specs=(pl.BlockSpec((rows_per_tile, 1), lambda i: (i, 0)),
                       pl.BlockSpec((rows_per_tile, 1), lambda i: (i, 0))),
            compiler_params=pltpu.CompilerParams(
                dimension_semantics=("parallel",),    # row tiles are independent
                vmem_limit_bytes=vmem_limit,
            ),
            cost_estimate=cost,
        )

    try:
        y_flat, c_flat = build_call(True)(x2d, w1_p, b1_p, w2_p, b2_s)
    except Exception:
        # pipeline_mode / pl.Buffered(1) unsupported on this version: default buffering.
        y_flat, c_flat = build_call(False)(x2d, w1_p, b1_p, w2_p, b2_s)

    # Final per-subject masked mean: O(B*S) scalars, done in plain XLA (the heavy
    # per-sentence work + masking already happened inside the kernel).
    yv = y_flat[:total_rows, 0].reshape(B, S)
    cv = c_flat[:total_rows, 0].reshape(B, S)
    cnt = jnp.maximum(jnp.sum(cv, axis=1, keepdims=True), 1.0)
    return jnp.sum(yv, axis=1, keepdims=True) / cnt                 # (B, 1)


def rs_classifier_ref(x, w1, b1, w2, b2):
    """Pure-JAX reference mirroring _predict(X, subj_mean=True) with the stand-in head."""
    B, S, L, F = x.shape
    pooled = jnp.mean(x, axis=2)                                        # (B, S, F)
    h = jnp.maximum(pooled @ w1 + jnp.reshape(b1, (1, 1, -1)), 0.0)     # (B, S, H)
    y = (h @ w2)[..., 0] + jnp.reshape(jnp.asarray(b2), ())             # (B, S)
    mask = jnp.any(x != 0, axis=(2, 3)).astype(jnp.float32)             # (B, S)
    cnt = jnp.maximum(jnp.sum(mask, axis=1, keepdims=True), 1.0)        # (B, 1)
    return jnp.sum(y * mask, axis=1, keepdims=True) / cnt               # (B, 1)


if __name__ == "__main__":
    # subjects, sentences/subject, tokens/sentence, eyetracking features, hidden
    B, S, L, F, H = 12, 6, 16, 32, 32

    key = jax.random.PRNGKey(0)
    kx, kw1, kb1, kw2, kb2 = jax.random.split(key, 5)

    x = jax.random.normal(kx, (B, S, L, F), dtype=jnp.float32)
    # make some sentences all-zero so the nonzero-sentence masking is exercised
    x = x.at[1, 3:].set(0.0)
    x = x.at[0, 2].set(0.0)
    x = x.at[7, 0:4].set(0.0)

    w1 = jax.random.normal(kw1, (F, H), dtype=jnp.float32) * 0.1
    b1 = jax.random.normal(kb1, (H,), dtype=jnp.float32) * 0.01
    w2 = jax.random.normal(kw2, (H, 1), dtype=jnp.float32) * 0.1
    b2 = jax.random.normal(kb2, (1, 1), dtype=jnp.float32) * 0.01

    ref = jax.block_until_ready(rs_classifier_ref(x, w1, b1, w2, b2))

    # f32 path (exact module semantics).
    out = jax.block_until_ready(rs_classifier_predict(x, w1, b1, w2, b2))
    assert out.shape == (B, 1), out.shape
    assert jnp.allclose(out, ref, atol=1e-4, rtol=1e-4), (out, ref)

    # bf16 MXU path (v5e optimization); looser tolerance for the bf16 matmul.
    out_bf16 = jax.block_until_ready(
        rs_classifier_predict(x, w1, b1, w2, b2, use_bf16_matmul=True))
    assert out_bf16.shape == (B, 1), out_bf16.shape
    assert jnp.allclose(out_bf16, ref, atol=1e-2, rtol=1e-2), (out_bf16, ref)

    print("KERNEL_OK")
</pallas_src>

<mosaic_0001>
module attributes {stable_mosaic.version = 11 : i64} {
  func.func @rs_classifier_kernel(%arg0: i32, %arg1: memref<72x512xf32, #tpu.memory_space<vmem>>, %arg2: memref<512x128xf32, #tpu.memory_space<vmem>>, %arg3: memref<1x128xf32, #tpu.memory_space<vmem>>, %arg4: memref<1x128xf32, #tpu.memory_space<vmem>>, %arg5: memref<1x1xf32, #tpu.memory_space<smem>>, %arg6: memref<72x1xf32, #tpu.memory_space<vmem>>, %arg7: memref<72x1xf32, #tpu.memory_space<vmem>>) attributes {dimension_semantics = [#tpu.dimension_semantics<parallel>], iteration_bounds = array<i64: 1>, scalar_prefetch = 0 : i64, scratch_operands = 0 : i64, tpu.core_type = #tpu.core_type<tc>, window_params = [{transform_indices = @transform_0, window_bounds = array<i64: 72, 512>}, {pipeline_mode = #tpu.pipeline_mode<synchronous>, transform_indices = @transform_1, window_bounds = array<i64: 512, 128>}, {pipeline_mode = #tpu.pipeline_mode<synchronous>, transform_indices = @transform_2, window_bounds = array<i64: 1, 128>}, {pipeline_mode = #tpu.pipeline_mode<synchronous>, transform_indices = @transform_3, window_bounds = array<i64: 1, 128>}, {transform_indices = @transform_4, window_bounds = array<i64: 1, 1>}, {transform_indices = @transform_5, window_bounds = array<i64: 72, 1>}, {transform_indices = @transform_6, window_bounds = array<i64: 72, 1>}]} {
    %c0 = arith.constant 0 : index
    %c0_0 = arith.constant 0 : index
    %0 = vector.load %arg1[%c0, %c0_0] : memref<72x512xf32, #tpu.memory_space<vmem>>, vector<72x512xf32>
    %1 = math.absf %0 : vector<72x512xf32>
    %cst = arith.constant dense<0xFF800000> : vector<72xf32>
    %2 = vector.multi_reduction <maximumf>, %1, %cst [1] : vector<72x512xf32> to vector<72xf32>
    %3 = vector.shape_cast %2 : vector<72xf32> to vector<72x1xf32>
    %cst_1 = arith.constant 0.000000e+00 : f32
    %4 = vector.broadcast %cst_1 : f32 to vector<72x1xf32>
    %5 = arith.cmpf ogt, %3, %4 : vector<72x1xf32>
    %c72_i32 = arith.constant 72 : i32
    %6 = arith.muli %arg0, %c72_i32 : i32
    %7 = tpu.iota {dimensions = array<i32: 0>} : vector<72x1xi32>
    %8 = vector.broadcast %6 : i32 to vector<72x1xi32>
    %9 = arith.addi %8, %7 : vector<72x1xi32>
    %c72_i32_2 = arith.constant 72 : i32
    %10 = vector.broadcast %c72_i32_2 : i32 to vector<72x1xi32>
    %11 = arith.cmpi slt, %9, %10 : vector<72x1xi32>
    %12 = arith.andi %5, %11 : vector<72x1xi1>
    %c0_3 = arith.constant 0 : index
    %c0_4 = arith.constant 0 : index
    %13 = vector.load %arg2[%c0_3, %c0_4] : memref<512x128xf32, #tpu.memory_space<vmem>>, vector<512x128xf32>
    %cst_5 = arith.constant dense<0.000000e+00> : vector<72x128xf32>
    %14 = tpu.matmul %0, %13, %cst_5 {dimension_numbers = #tpu.dot_dimension_numbers<[1], [0], [0], [1], [0, 0, 1, 1], [], []>} : vector<72x512xf32>, vector<512x128xf32>, vector<72x128xf32> -> vector<72x128xf32>
    %c0_6 = arith.constant 0 : index
    %c0_7 = arith.constant 0 : index
    %15 = vector.load %arg3[%c0_6, %c0_7] : memref<1x128xf32, #tpu.memory_space<vmem>>, vector<1x128xf32>
    %16 = vector.broadcast %15 : vector<1x128xf32> to vector<72x128xf32>
    %17 = arith.addf %14, %16 : vector<72x128xf32>
    %cst_8 = arith.constant 0.000000e+00 : f32
    %18 = vector.broadcast %cst_8 : f32 to vector<72x128xf32>
    %19 = arith.maximumf %17, %18 : vector<72x128xf32>
    %c0_9 = arith.constant 0 : index
    %c0_10 = arith.constant 0 : index
    %20 = vector.load %arg4[%c0_9, %c0_10] : memref<1x128xf32, #tpu.memory_space<vmem>>, vector<1x128xf32>
    %21 = vector.broadcast %20 : vector<1x128xf32> to vector<72x128xf32>
    %22 = arith.mulf %19, %21 : vector<72x128xf32>
    %cst_11 = arith.constant dense<0.000000e+00> : vector<72xf32>
    %23 = vector.multi_reduction <add>, %22, %cst_11 [1] : vector<72x128xf32> to vector<72xf32>
    %24 = vector.shape_cast %23 : vector<72xf32> to vector<72x1xf32>
    %c0_12 = arith.constant 0 : index
    %c0_13 = arith.constant 0 : index
    %25 = memref.load %arg5[%c0_12, %c0_13] : memref<1x1xf32, #tpu.memory_space<smem>>
    %26 = vector.broadcast %25 : f32 to vector<72x1xf32>
    %27 = arith.addf %24, %26 : vector<72x1xf32>
    %cst_14 = arith.constant 0.000000e+00 : f32
    %28 = vector.broadcast %cst_14 : f32 to vector<72x1xf32>
    %29 = arith.select %12, %27, %28 : vector<72x1xi1>, vector<72x1xf32>
    %c0_15 = arith.constant 0 : index
    %c0_16 = arith.constant 0 : index
    %30 = vector.load %arg6[%c0_15, %c0_16] : memref<72x1xf32, #tpu.memory_space<vmem>>, vector<72x1xf32>
    tpu.vector_store %arg6[%c0_15, %c0_16], %29 {strides = array<i32>} : memref<72x1xf32, #tpu.memory_space<vmem>>, vector<72x1xf32>,
    %31 = arith.extui %12 : vector<72x1xi1> to vector<72x1xi32>
    %32 = arith.sitofp %31 : vector<72x1xi32> to vector<72x1xf32>
    %c0_17 = arith.constant 0 : index
    %c0_18 = arith.constant 0 : index
    %33 = vector.load %arg7[%c0_17, %c0_18] : memref<72x1xf32, #tpu.memory_space<vmem>>, vector<72x1xf32>
    tpu.vector_store %arg7[%c0_17, %c0_18], %32 {strides = array<i32>} : memref<72x1xf32, #tpu.memory_space<vmem>>, vector<72x1xf32>,
    return
  }
  func.func @transform_0(%arg0: i32) -> (i32, i32) {
    %c0_i32 = arith.constant 0 : i32
    %c0_i32_0 = arith.constant 0 : i32
    return %arg0, %c0_i32 : i32, i32
  }
  func.func @transform_1(%arg0: i32) -> (i32, i32) {
    %c0_i32 = arith.constant 0 : i32
    %c0_i32_0 = arith.constant 0 : i32
    %c0_i32_1 = arith.constant 0 : i32
    return %c0_i32, %c0_i32_0 : i32, i32
  }
  func.func @transform_2(%arg0: i32) -> (i32, i32) {
    %c0_i32 = arith.constant 0 : i32
    %c0_i32_0 = arith.constant 0 : i32
    %c0_i32_1 = arith.constant 0 : i32
    return %c0_i32, %c0_i32_0 : i32, i32
  }
  func.func @transform_3(%arg0: i32) -> (i32, i32) {
    %c0_i32 = arith.constant 0 : i32
    %c0_i32_0 = arith.constant 0 : i32
    %c0_i32_1 = arith.constant 0 : i32
    return %c0_i32, %c0_i32_0 : i32, i32
  }
  func.func @transform_4(%arg0: i32) -> (i32, i32) {
    %c0_i32 = arith.constant 0 : i32
    %c0_i32_0 = arith.constant 0 : i32
    %c0_i32_1 = arith.constant 0 : i32
    return %c0_i32, %c0_i32_0 : i32, i32
  }
  func.func @transform_5(%arg0: i32) -> (i32, i32) {
    %c0_i32 = arith.constant 0 : i32
    %c0_i32_0 = arith.constant 0 : i32
    return %arg0, %c0_i32 : i32, i32
  }
  func.func @transform_6(%arg0: i32) -> (i32, i32) {
    %c0_i32 = arith.constant 0 : i32
    %c0_i32_0 = arith.constant 0 : i32
    return %arg0, %c0_i32 : i32, i32
  }
}

module attributes {stable_mosaic.version = 11 : i64} {
  func.func @rs_classifier_kernel(%arg0: i32, %arg1: memref<72x512xf32, #tpu.memory_space<vmem>>, %arg2: memref<512x128xf32, #tpu.memory_space<vmem>>, %arg3: memref<1x128xf32, #tpu.memory_space<vmem>>, %arg4: memref<1x128xf32, #tpu.memory_space<vmem>>, %arg5: memref<1x1xf32, #tpu.memory_space<smem>>, %arg6: memref<72x1xf32, #tpu.memory_space<vmem>>, %arg7: memref<72x1xf32, #tpu.memory_space<vmem>>) attributes {dimension_semantics = [#tpu.dimension_semantics<parallel>], iteration_bounds = array<i64: 1>, scalar_prefetch = 0 : i64, scratch_operands = 0 : i64, tpu.core_type = #tpu.core_type<tc>, window_params = [{transform_indices = @transform_0, window_bounds = array<i64: 72, 512>}, {pipeline_mode = #tpu.pipeline_mode<synchronous>, transform_indices = @transform_1, window_bounds = array<i64: 512, 128>}, {pipeline_mode = #tpu.pipeline_mode<synchronous>, transform_indices = @transform_2, window_bounds = array<i64: 1, 128>}, {pipeline_mode = #tpu.pipeline_mode<synchronous>, transform_indices = @transform_3, window_bounds = array<i64: 1, 128>}, {transform_indices = @transform_4, window_bounds = array<i64: 1, 1>}, {transform_indices = @transform_5, window_bounds = array<i64: 72, 1>}, {transform_indices = @transform_6, window_bounds = array<i64: 72, 1>}]} {
    %c0 = arith.constant 0 : index
    %c0_0 = arith.constant 0 : index
    %0 = vector.load %arg1[%c0, %c0_0] : memref<72x512xf32, #tpu.memory_space<vmem>>, vector<72x512xf32>
    %1 = math.absf %0 : vector<72x512xf32>
    %cst = arith.constant dense<0xFF800000> : vector<72xf32>
    %2 = vector.multi_reduction <maximumf>, %1, %cst [1] : vector<72x512xf32> to vector<72xf32>
    %3 = vector.shape_cast %2 : vector<72xf32> to vector<72x1xf32>
    %cst_1 = arith.constant 0.000000e+00 : f32
    %4 = vector.broadcast %cst_1 : f32 to vector<72x1xf32>
    %5 = arith.cmpf ogt, %3, %4 : vector<72x1xf32>
    %c72_i32 = arith.constant 72 : i32
    %6 = arith.muli %arg0, %c72_i32 : i32
    %7 = tpu.iota {dimensions = array<i32: 0>} : vector<72x1xi32>
    %8 = vector.broadcast %6 : i32 to vector<72x1xi32>
    %9 = arith.addi %8, %7 : vector<72x1xi32>
    %c72_i32_2 = arith.constant 72 : i32
    %10 = vector.broadcast %c72_i32_2 : i32 to vector<72x1xi32>
    %11 = arith.cmpi slt, %9, %10 : vector<72x1xi32>
    %12 = arith.andi %5, %11 : vector<72x1xi1>
    %c0_3 = arith.constant 0 : index
    %c0_4 = arith.constant 0 : index
    %13 = vector.load %arg2[%c0_3, %c0_4] : memref<512x128xf32, #tpu.memory_space<vmem>>, vector<512x128xf32>
    %cst_5 = arith.constant dense<0.000000e+00> : vector<72x128xf32>
    %14 = tpu.matmul %0, %13, %cst_5 {dimension_numbers = #tpu.dot_dimension_numbers<[1], [0], [0], [1], [0, 0, 1, 1], [], []>} : vector<72x512xf32>, vector<512x128xf32>, vector<72x128xf32> -> vector<72x128xf32>
    %c0_6 = arith.constant 0 : index
    %c0_7 = arith.constant 0 : index
    %15 = vector.load %arg3[%c0_6, %c0_7] : memref<1x128xf32, #tpu.memory_space<vmem>>, vector<1x128xf32>
    %16 = vector.broadcast %15 : vector<1x128xf32> to vector<72x128xf32>
    %17 = arith.addf %14, %16 : vector<72x128xf32>
    %cst_8 = arith.constant 0.000000e+00 : f32
    %18 = vector.broadcast %cst_8 : f32 to vector<72x128xf32>
    %19 = arith.maximumf %17, %18 : vector<72x128xf32>
    %c0_9 = arith.constant 0 : index
    %c0_10 = arith.constant 0 : index
    %20 = vector.load %arg4[%c0_9, %c0_10] : memref<1x128xf32, #tpu.memory_space<vmem>>, vector<1x128xf32>
    %21 = vector.broadcast %20 : vector<1x128xf32> to vector<72x128xf32>
    %22 = arith.mulf %19, %21 : vector<72x128xf32>
    %cst_11 = arith.constant dense<0.000000e+00> : vector<72xf32>
    %23 = vector.multi_reduction <add>, %22, %cst_11 [1] : vector<72x128xf32> to vector<72xf32>
    %24 = vector.shape_cast %23 : vector<72xf32> to vector<72x1xf32>
    %c0_12 = arith.constant 0 : index
    %c0_13 = arith.constant 0 : index
    %25 = memref.load %arg5[%c0_12, %c0_13] : memref<1x1xf32, #tpu.memory_space<smem>>
    %26 = vector.broadcast %25 : f32 to vector<72x1xf32>
    %27 = arith.addf %24, %26 : vector<72x1xf32>
    %cst_14 = arith.constant 0.000000e+00 : f32
    %28 = vector.broadcast %cst_14 : f32 to vector<72x1xf32>
    %29 = arith.select %12, %27, %28 : vector<72x1xi1>, vector<72x1xf32>
    %c0_15 = arith.constant 0 : index
    %c0_16 = arith.constant 0 : index
    %30 = vector.load %arg6[%c0_15, %c0_16] : memref<72x1xf32, #tpu.memory_space<vmem>>, vector<72x1xf32>
    tpu.vector_store %arg6[%c0_15, %c0_16], %29 {strides = array<i32>} : memref<72x1xf32, #tpu.memory_space<vmem>>, vector<72x1xf32>,
    %31 = arith.extui %12 : vector<72x1xi1> to vector<72x1xi32>
    %32 = arith.sitofp %31 : vector<72x1xi32> to vector<72x1xf32>
    %c0_17 = arith.constant 0 : index
    %c0_18 = arith.constant 0 : index
    %33 = vector.load %arg7[%c0_17, %c0_18] : memref<72x1xf32, #tpu.memory_space<vmem>>, vector<72x1xf32>
    tpu.vector_store %arg7[%c0_17, %c0_18], %32 {strides = array<i32>} : memref<72x1xf32, #tpu.memory_space<vmem>>, vector<72x1xf32>,
    return
  }
  func.func @transform_0(%arg0: i32) -> (i32, i32) {
    %c0_i32 = arith.constant 0 : i32
    %c0_i32_0 = arith.constant 0 : i32
    return %arg0, %c0_i32 : i32, i32
  }
  func.func @transform_1(%arg0: i32) -> (i32, i32) {
    %c0_i32 = arith.constant 0 : i32
    %c0_i32_0 = arith.constant 0 : i32
    %c0_i32_1 = arith.constant 0 : i32
    return %c0_i32, %c0_i32_0 : i32, i32
  }
  func.func @transform_2(%arg0: i32) -> (i32, i32) {
    %c0_i32 = arith.constant 0 : i32
    %c0_i32_0 = arith.constant 0 : i32
    %c0_i32_1 = arith.constant 0 : i32
    return %c0_i32, %c0_i32_0 : i32, i32
  }
  func.func @transform_3(%arg0: i32) -> (i32, i32) {
    %c0_i32 = arith.constant 0 : i32
    %c0_i32_0 = arith.constant 0 : i32
    %c0_i32_1 = arith.constant 0 : i32
    return %c0_i32, %c0_i32_0 : i32, i32
  }
  func.func @transform_4(%arg0: i32) -> (i32, i32) {
    %c0_i32 = arith.constant 0 : i32
    %c0_i32_0 = arith.constant 0 : i32
    %c0_i32_1 = arith.constant 0 : i32
    return %c0_i32, %c0_i32_0 : i32, i32
  }
  func.func @transform_5(%arg0: i32) -> (i32, i32) {
    %c0_i32 = arith.constant 0 : i32
    %c0_i32_0 = arith.constant 0 : i32
    return %arg0, %c0_i32 : i32, i32
  }
  func.func @transform_6(%arg0: i32) -> (i32, i32) {
    %c0_i32 = arith.constant 0 : i32
    %c0_i32_0 = arith.constant 0 : i32
    return %arg0, %c0_i32 : i32, i32
  }
}

</mosaic_0001>

<llo_original>
// kernel: tpu_custom_call.1
$region0: #{tpu_custom_call.1}
  #allocation0 [shape = 'u32[]', space=smem, size = 0x4, offset = 0x4, fixed_abs, tag = 'smem constant byte address 0x4 - core index']
  #allocation1 [shape = 'u32[144,128]{1,0:T(1,128)}', space=vmem, size = 0x12000, scoped, tag = 'internal scratch']
  #allocation2 [shape = 'f32[1,1]{1,0:T(1,128)S(6)}', space=smem, size = 0x200, scoped, tag = 'scoped memory for tpu_custom_call.1']
  %s0 = inlined_call_operand.hbm [shape: f32[72,512], index: 0, kind: input, shape index: {}]
  %s1 = inlined_call_operand.hbm [shape: f32[512,128], index: 1, kind: input, shape index: {}]
  %s2 = inlined_call_operand.vmem [shape: f32[1,128], index: 2, kind: input, shape index: {}]
  %s3 = inlined_call_operand.vmem [shape: f32[1,128], index: 3, kind: input, shape index: {}]
  %s4 = inlined_call_operand.<no memory space> [shape: f32[1,1], index: 4, kind: input, shape index: {}]
  %s5 = inlined_call_operand.vmem [shape: f32[72,1], index: 5, kind: output, shape index: {0}]
  %s6 = inlined_call_operand.vmem [shape: f32[72,1], index: 6, kind: output, shape index: {1}]
  %7 = xla_tuple %s5, %s6
  %s8 = sld [smem:[#allocation0]]
  $region46: #{tpu_custom_call.1} parent=0
    _
  %s10 = ssub.s32 1, %s8
  %s11 = scalar_select 0, %s10, %s8
  %12 = sst [smem:[#allocation2]] %s4
  $region1: #{tpu_custom_call.1} parent=0
    #allocation3 [shape = 'u8[147456]{0}', space=vmem, size = 0x24000, scoped, tag = 'input window, operand 0, single buffered']
    #allocation4 [shape = 's32[1]{0}', space=sflag, size = 0x4, scoped, tag = 'scoped memory for tpu_custom_call.1']
    #allocation5 [shape = 'u8[262144]{0}', space=vmem, size = 0x40000, scoped, tag = 'input window, operand 1, single buffered']
    #allocation6 [shape = 's32[1]{0}', space=sflag, size = 0x4, scoped, tag = 'scoped memory for tpu_custom_call.1']
    %13 = vsyncpa [#allocation4], 0
    %14 = vsyncpa [#allocation6], 0
    // Predicated region
    $region2: #{tpu_custom_call.1} parent=1 // pred_check
      _
    $region3: #{tpu_custom_call.1} parent=1 // pred_check_branch
      %16 = sbr.rel (0) target = $region5
    $region4: #{tpu_custom_call.1} parent=1 // pred_region
      %s18 = ssub.s32 4608, 4608
      %19 = vsyncadd [#allocation4], %s18
      %s20 = sshll.u32 [#allocation3], 4
      %s21 = int_to_ptr.vmem [resolvable:$true] %s20
      %26 = dma.hbm_to_vmem [thread:$0]  %s0, 4608, %s21, [#allocation4], 512, 512, 32
    $region5: #{tpu_custom_call.1} parent=1 // pred_fallthru
      _
    // Predicated region
    $region6: #{tpu_custom_call.1} parent=1 // pred_check
      _
    $region7: #{tpu_custom_call.1} parent=1 // pred_check_branch
      %28 = sbr.rel (0) target = $region9
    $region8: #{tpu_custom_call.1} parent=1 // pred_region
      %s30 = ssub.s32 8192, 8192
      %31 = vsyncadd [#allocation6], %s30
      %s32 = sshll.u32 [#allocation5], 4
      %s33 = int_to_ptr.vmem [resolvable:$true] %s32
      %38 = dma.hbm_to_vmem [thread:$0]  %s1, 8192, %s33, [#allocation6], 128, 128, 8
    $region9: #{tpu_custom_call.1} parent=1 // pred_fallthru
      _
    // Predicated region
    $region10: #{tpu_custom_call.1} parent=1 // pred_check
      _
    $region11: #{tpu_custom_call.1} parent=1 // pred_check_branch
      %40 = sbr.rel (0) target = $region13
    $region12: #{tpu_custom_call.1} parent=1 // pred_region
      _
    $region13: #{tpu_custom_call.1} parent=1 // pred_fallthru
      _
    // Predicated region
    $region14: #{tpu_custom_call.1} parent=1 // pred_check
      _
    $region15: #{tpu_custom_call.1} parent=1 // pred_check_branch
      %42 = sbr.rel (0) target = $region17
    $region16: #{tpu_custom_call.1} parent=1 // pred_region
      _
    $region17: #{tpu_custom_call.1} parent=1 // pred_fallthru
      _
    // Predicated region
    $region18: #{tpu_custom_call.1} parent=1 // pred_check
      _
    $region19: #{tpu_custom_call.1} parent=1 // pred_check_branch
      %44 = sbr.rel (0) target = $region21
    $region20: #{tpu_custom_call.1} parent=1 // pred_region
      _
    $region21: #{tpu_custom_call.1} parent=1 // pred_fallthru
      _
    // Predicated region
    $region22: #{tpu_custom_call.1} parent=1 // pred_check
      _
    $region23: #{tpu_custom_call.1} parent=1 // pred_check_branch
      %46 = sbr.rel (0) target = $region25
    $region24: #{tpu_custom_call.1} parent=1 // pred_region
      %47 = dma.done [#allocation4], 4608
    $region25: #{tpu_custom_call.1} parent=1 // pred_fallthru
      _
    // Predicated region
    $region26: #{tpu_custom_call.1} parent=1 // pred_check
      _
    $region27: #{tpu_custom_call.1} parent=1 // pred_check_branch
      %49 = sbr.rel (0) target = $region29
    $region28: #{tpu_custom_call.1} parent=1 // pred_region
      %50 = dma.done [#allocation6], 8192
    $region29: #{tpu_custom_call.1} parent=1 // pred_fallthru
      _
    %v51 = vld [vmem:[#allocation3] sm:$0xff]
    %v52 = vld [vmem:[#allocation3 + $0x8] sm:$0xff]
    %v53 = vld [vmem:[#allocation3 + $0x10] sm:$0xff]
    %v54 = vld [vmem:[#allocation3 + $0x18] sm:$0xff]
    %v55 = vld [vmem:[#allocation3 + $0x20] sm:$0xff]
    %v56 = vld [vmem:[#allocation3 + $0x28] sm:$0xff]
    %v57 = vld [vmem:[#allocation3 + $0x30] sm:$0xff]
    %v58 = vld [vmem:[#allocation3 + $0x38] sm:$0xff]
    %v59 = vld [vmem:[#allocation3 + $0x40] sm:$0xff]
    %v60 = vld [vmem:[#allocation3 + $0x48] sm:$0xff]
    %v61 = vld [vmem:[#allocation3 + $0x50] sm:$0xff]
    %v62 = vld [vmem:[#allocation3 + $0x58] sm:$0xff]
    %v63 = vld [vmem:[#allocation3 + $0x60] sm:$0xff]
    %v64 = vld [vmem:[#allocation3 + $0x68] sm:$0xff]
    %v65 = vld [vmem:[#allocation3 + $0x70] sm:$0xff]
    %v66 = vld [vmem:[#allocation3 + $0x78] sm:$0xff]
    %v67 = vld [vmem:[#allocation3 + $0x80] sm:$0xff]
    %v68 = vld [vmem:[#allocation3 + $0x88] sm:$0xff]
    %v69 = vld [vmem:[#allocation3 + $0x90] sm:$0xff]
    %v70 = vld [vmem:[#allocation3 + $0x98] sm:$0xff]
    %v71 = vld [vmem:[#allocation3 + $0xa0] sm:$0xff]
    %v72 = vld [vmem:[#allocation3 + $0xa8] sm:$0xff]
    %v73 = vld [vmem:[#allocation3 + $0xb0] sm:$0xff]
    %v74 = vld [vmem:[#allocation3 + $0xb8] sm:$0xff]
    %v75 = vld [vmem:[#allocation3 + $0xc0] sm:$0xff]
    %v76 = vld [vmem:[#allocation3 + $0xc8] sm:$0xff]
    %v77 = vld [vmem:[#allocation3 + $0xd0] sm:$0xff]
    %v78 = vld [vmem:[#allocation3 + $0xd8] sm:$0xff]
    %v79 = vld [vmem:[#allocation3 + $0xe0] sm:$0xff]
    %v80 = vld [vmem:[#allocation3 + $0xe8] sm:$0xff]
    %v81 = vld [vmem:[#allocation3 + $0xf0] sm:$0xff]
    %v82 = vld [vmem:[#allocation3 + $0xf8] sm:$0xff]
    %v83 = vld [vmem:[#allocation3 + $0x100] sm:$0xff]
    %v84 = vld [vmem:[#allocation3 + $0x108] sm:$0xff]
    %v85 = vld [vmem:[#allocation3 + $0x110] sm:$0xff]
    %v86 = vld [vmem:[#allocation3 + $0x118] sm:$0xff]
    %v87 = vand.u32 2147483647, %v51
    %v88 = vand.u32 2147483647, %v52
    %v89 = vand.u32 2147483647, %v53
    %v90 = vand.u32 2147483647, %v54
    %v91 = vand.u32 2147483647, %v55
    %v92 = vand.u32 2147483647, %v56
    %v93 = vand.u32 2147483647, %v57
    %v94 = vand.u32 2147483647, %v58
    %v95 = vand.u32 2147483647, %v59
    %v96 = vand.u32 2147483647, %v60
    %v97 = vand.u32 2147483647, %v61
    %v98 = vand.u32 2147483647, %v62
    %v99 = vand.u32 2147483647, %v63
    %v100 = vand.u32 2147483647, %v64
    %v101 = vand.u32 2147483647, %v65
    %v102 = vand.u32 2147483647, %v66
    %v103 = vand.u32 2147483647, %v67
    %v104 = vand.u32 2147483647, %v68
    %v105 = vand.u32 2147483647, %v69
    %v106 = vand.u32 2147483647, %v70
    %v107 = vand.u32 2147483647, %v71
    %v108 = vand.u32 2147483647, %v72
    %v109 = vand.u32 2147483647, %v73
    %v110 = vand.u32 2147483647, %v74
    %v111 = vand.u32 2147483647, %v75
    %v112 = vand.u32 2147483647, %v76
    %v113 = vand.u32 2147483647, %v77
    %v114 = vand.u32 2147483647, %v78
    %v115 = vand.u32 2147483647, %v79
    %v116 = vand.u32 2147483647, %v80
    %v117 = vand.u32 2147483647, %v81
    %v118 = vand.u32 2147483647, %v82
    %v119 = vand.u32 2147483647, %v83
    %v120 = vand.u32 2147483647, %v84
    %v121 = vand.u32 2147483647, %v85
    %v122 = vand.u32 2147483647, %v86
    %v123 = vmax.f32 %v87, %v88
    %v124 = vmax.f32 %v123, %v89
    %v125 = vmax.f32 %v124, %v90
    %126 = vmax.xlane.f32.xlu0 %v125
    %v127 = vpop.xlane.xlu0 %126
    %v128 = vmax.f32 %v91, %v92
    %v129 = vmax.f32 %v128, %v93
    %v130 = vmax.f32 %v129, %v94
    %131 = vmax.xlane.f32.xlu0 %v130
    %v132 = vpop.xlane.xlu0 %131
    %v133 = vmax.f32 %v95, %v96
    %v134 = vmax.f32 %v133, %v97
    %v135 = vmax.f32 %v134, %v98
    %136 = vmax.xlane.f32.xlu0 %v135
    %v137 = vpop.xlane.xlu0 %136
    %v138 = vmax.f32 %v99, %v100
    %v139 = vmax.f32 %v138, %v101
    %v140 = vmax.f32 %v139, %v102
    %141 = vmax.xlane.f32.xlu0 %v140
    %v142 = vpop.xlane.xlu0 %141
    %v143 = vmax.f32 %v103, %v104
    %v144 = vmax.f32 %v143, %v105
    %v145 = vmax.f32 %v144, %v106
    %146 = vmax.xlane.f32.xlu0 %v145
    %v147 = vpop.xlane.xlu0 %146
    %v148 = vmax.f32 %v107, %v108
    %v149 = vmax.f32 %v148, %v109
    %v150 = vmax.f32 %v149, %v110
    %151 = vmax.xlane.f32.xlu0 %v150
    %v152 = vpop.xlane.xlu0 %151
    %v153 = vmax.f32 %v111, %v112
    %v154 = vmax.f32 %v153, %v113
    %v155 = vmax.f32 %v154, %v114
    %156 = vmax.xlane.f32.xlu0 %v155
    %v157 = vpop.xlane.xlu0 %156
    %v158 = vmax.f32 %v115, %v116
    %v159 = vmax.f32 %v158, %v117
    %v160 = vmax.f32 %v159, %v118
    %161 = vmax.xlane.f32.xlu0 %v160
    %v162 = vpop.xlane.xlu0 %161
    %v163 = vmax.f32 %v119, %v120
    %v164 = vmax.f32 %v163, %v121
    %v165 = vmax.f32 %v164, %v122
    %166 = vmax.xlane.f32.xlu0 %v165
    %v167 = vpop.xlane.xlu0 %166
    %vm168 = vcmp.gt.f32.partialorder %v127, 0.0
    %vm169 = vcmp.gt.f32.partialorder %v132, 0.0
    %vm170 = vcmp.gt.f32.partialorder %v137, 0.0
    %vm171 = vcmp.gt.f32.partialorder %v142, 0.0
    %vm172 = vcmp.gt.f32.partialorder %v147, 0.0
    %vm173 = vcmp.gt.f32.partialorder %v152, 0.0
    %vm174 = vcmp.gt.f32.partialorder %v157, 0.0
    %vm175 = vcmp.gt.f32.partialorder %v162, 0.0
    %vm176 = vcmp.gt.f32.partialorder %v167, 0.0
    %s177 = smul.u32 0, 72
    %v178 = vlaneseq
    %v179 = vshrl.u32 %v178, 7
    %v180 = vadd.s32 %v179, 8
    %v181 = vadd.s32 %v179, 16
    %v182 = vadd.s32 %v179, 24
    %v183 = vadd.s32 %v179, 32
    %v184 = vadd.s32 %v179, 40
    %v185 = vadd.s32 %v179, 48
    %v186 = vadd.s32 %v179, 56
    %v187 = vadd.s32 %v179, 64
    %v188 = vstv %s177
    %v189 = vadd.s32 %v188, %v179
    %v190 = vadd.s32 %v188, %v180
    %v191 = vadd.s32 %v188, %v181
    %v192 = vadd.s32 %v188, %v182
    %v193 = vadd.s32 %v188, %v183
    %v194 = vadd.s32 %v188, %v184
    %v195 = vadd.s32 %v188, %v185
    %v196 = vadd.s32 %v188, %v186
    %v197 = vadd.s32 %v188, %v187
    %vm198 = vcmp.lt.s32.totalorder %v189, 72
    %vm199 = vcmp.lt.s32.totalorder %v190, 72
    %vm200 = vcmp.lt.s32.totalorder %v191, 72
    %vm201 = vcmp.lt.s32.totalorder %v192, 72
    %vm202 = vcmp.lt.s32.totalorder %v193, 72
    %vm203 = vcmp.lt.s32.totalorder %v194, 72
    %vm204 = vcmp.lt.s32.totalorder %v195, 72
    %vm205 = vcmp.lt.s32.totalorder %v196, 72
    %vm206 = vcmp.lt.s32.totalorder %v197, 72
    %vm207 = vmand %vm168, %vm198
    %vm208 = vmand %vm169, %vm199
    %vm209 = vmand %vm170, %vm200
    %vm210 = vmand %vm171, %vm201
    %vm211 = vmand %vm172, %vm202
    %vm212 = vmand %vm173, %vm203
    %vm213 = vmand %vm174, %vm204
    %vm214 = vmand %vm175, %vm205
    %vm215 = vmand %vm176, %vm206
    %v216 = vld [vmem:[#allocation5] sm:$0xff]
    %v217 = vld [vmem:[#allocation5 + $0x8] sm:$0xff]
    %v218 = vld [vmem:[#allocation5 + $0x10] sm:$0xff]
    %v219 = vld [vmem:[#allocation5 + $0x18] sm:$0xff]
    %v220 = vld [vmem:[#allocation5 + $0x20] sm:$0xff]
    %v221 = vld [vmem:[#allocation5 + $0x28] sm:$0xff]
    %v222 = vld [vmem:[#allocation5 + $0x30] sm:$0xff]
    %v223 = vld [vmem:[#allocation5 + $0x38] sm:$0xff]
    %v224 = vld [vmem:[#allocation5 + $0x40] sm:$0xff]
    %v225 = vld [vmem:[#allocation5 + $0x48] sm:$0xff]
    %v226 = vld [vmem:[#allocation5 + $0x50] sm:$0xff]
    %v227 = vld [vmem:[#allocation5 + $0x58] sm:$0xff]
    %v228 = vld [vmem:[#allocation5 + $0x60] sm:$0xff]
    %v229 = vld [vmem:[#allocation5 + $0x68] sm:$0xff]
    %v230 = vld [vmem:[#allocation5 + $0x70] sm:$0xff]
    %v231 = vld [vmem:[#allocation5 + $0x78] sm:$0xff]
    %v232 = vld [vmem:[#allocation5 + $0x80] sm:$0xff]
    %v233 = vld [vmem:[#allocation5 + $0x88] sm:$0xff]
    %v234 = vld [vmem:[#allocation5 + $0x90] sm:$0xff]
    %v235 = vld [vmem:[#allocation5 + $0x98] sm:$0xff]
    %v236 = vld [vmem:[#allocation5 + $0xa0] sm:$0xff]
    %v237 = vld [vmem:[#allocation5 + $0xa8] sm:$0xff]
    %v238 = vld [vmem:[#allocation5 + $0xb0] sm:$0xff]
    %v239 = vld [vmem:[#allocation5 + $0xb8] sm:$0xff]
    %v240 = vld [vmem:[#allocation5 + $0xc0] sm:$0xff]
    %v241 = vld [vmem:[#allocation5 + $0xc8] sm:$0xff]
    %v242 = vld [vmem:[#allocation5 + $0xd0] sm:$0xff]
    %v243 = vld [vmem:[#allocation5 + $0xd8] sm:$0xff]
    %v244 = vld [vmem:[#allocation5 + $0xe0] sm:$0xff]
    %v245 = vld [vmem:[#allocation5 + $0xe8] sm:$0xff]
    %v246 = vld [vmem:[#allocation5 + $0xf0] sm:$0xff]
    %v247 = vld [vmem:[#allocation5 + $0xf8] sm:$0xff]
    %v248 = vld [vmem:[#allocation5 + $0x100] sm:$0xff]
    %v249 = vld [vmem:[#allocation5 + $0x108] sm:$0xff]
    %v250 = vld [vmem:[#allocation5 + $0x110] sm:$0xff]
    %v251 = vld [vmem:[#allocation5 + $0x118] sm:$0xff]
    %v252 = vld [vmem:[#allocation5 + $0x120] sm:$0xff]
    %v253 = vld [vmem:[#allocation5 + $0x128] sm:$0xff]
    %v254 = vld [vmem:[#allocation5 + $0x130] sm:$0xff]
    %v255 = vld [vmem:[#allocation5 + $0x138] sm:$0xff]
    %v256 = vld [vmem:[#allocation5 + $0x140] sm:$0xff]
    %v257 = vld [vmem:[#allocation5 + $0x148] sm:$0xff]
    %v258 = vld [vmem:[#allocation5 + $0x150] sm:$0xff]
    %v259 = vld [vmem:[#allocation5 + $0x158] sm:$0xff]
    %v260 = vld [vmem:[#allocation5 + $0x160] sm:$0xff]
    %v261 = vld [vmem:[#allocation5 + $0x168] sm:$0xff]
    %v262 = vld [vmem:[#allocation5 + $0x170] sm:$0xff]
    %v263 = vld [vmem:[#allocation5 + $0x178] sm:$0xff]
    %v264 = vld [vmem:[#allocation5 + $0x180] sm:$0xff]
    %v265 = vld [vmem:[#allocation5 + $0x188] sm:$0xff]
    %v266 = vld [vmem:[#allocation5 + $0x190] sm:$0xff]
    %v267 = vld [vmem:[#allocation5 + $0x198] sm:$0xff]
    %v268 = vld [vmem:[#allocation5 + $0x1a0] sm:$0xff]
    %v269 = vld [vmem:[#allocation5 + $0x1a8] sm:$0xff]
    %v270 = vld [vmem:[#allocation5 + $0x1b0] sm:$0xff]
    %v271 = vld [vmem:[#allocation5 + $0x1b8] sm:$0xff]
    %v272 = vld [vmem:[#allocation5 + $0x1c0] sm:$0xff]
    %v273 = vld [vmem:[#allocation5 + $0x1c8] sm:$0xff]
    %v274 = vld [vmem:[#allocation5 + $0x1d0] sm:$0xff]
    %v275 = vld [vmem:[#allocation5 + $0x1d8] sm:$0xff]
    %v276 = vld [vmem:[#allocation5 + $0x1e0] sm:$0xff]
    %v277 = vld [vmem:[#allocation5 + $0x1e8] sm:$0xff]
    %v278 = vld [vmem:[#allocation5 + $0x1f0] sm:$0xff]
    %v279 = vld [vmem:[#allocation5 + $0x1f8] sm:$0xff]
    %v280 = vld [vmem:[%s2] sm:$0x1]
    %v282 = vlaneseq
    %v283 = vshrl.u32 %v282, 7
    %v284 = vsub.s32 0, %v283
    %v285 = vrot.slane %v280, %v284
    %287 = vmatprep.subr.mxu0 0.0
    %288 = vmatpush1.msra.mxu0 %v216
    %289 = vmatprep.subr.mxu0 0.0
    %290 = vmatpush1.msra.mxu0 %v217
    %291 = vmatprep.subr.mxu0 0.0
    %292 = vmatpush1.msra.mxu0 %v218
    %293 = vmatprep.subr.mxu0 0.0
    %294 = vmatpush1.msra.mxu0 %v219
    %295 = vmatprep.subr.mxu0 0.0
    %296 = vmatpush1.msra.mxu0 %v220
    %297 = vmatprep.subr.mxu0 0.0
    %298 = vmatpush1.msra.mxu0 %v221
    %299 = vmatprep.subr.mxu0 0.0
    %300 = vmatpush1.msra.mxu0 %v222
    %301 = vmatprep.subr.mxu0 0.0
    %302 = vmatpush1.msra.mxu0 %v223
    %303 = vmatprep.subr.mxu0 0.0
    %304 = vmatpush1.msra.mxu0 %v224
    %305 = vmatprep.subr.mxu0 0.0
    %306 = vmatpush1.msra.mxu0 %v225
    %307 = vmatprep.subr.mxu0 0.0
    %308 = vmatpush1.msra.mxu0 %v226
    %309 = vmatprep.subr.mxu0 0.0
    %310 = vmatpush1.msra.mxu0 %v227
    %311 = vmatprep.subr.mxu0 0.0
    %312 = vmatpush1.msra.mxu0 %v228
    %313 = vmatprep.subr.mxu0 0.0
    %314 = vmatpush1.msra.mxu0 %v229
    %315 = vmatprep.subr.mxu0 0.0
    %316 = vmatpush1.msra.mxu0 %v230
    %317 = vmatprep.subr.mxu0 0.0
    %318 = vmatpush1.msra.mxu0 %v231
    %319 = vmatprep.subr.mxu0 0.0
    %320 = vmatpush1.msra.mxu0 %v232
    %321 = vmatprep.subr.mxu0 0.0
    %322 = vmatpush1.msra.mxu0 %v233
    %323 = vmatprep.subr.mxu0 0.0
    %324 = vmatpush1.msra.mxu0 %v234
    %325 = vmatprep.subr.mxu0 0.0
    %326 = vmatpush1.msra.mxu0 %v235
    %327 = vmatprep.subr.mxu0 0.0
    %328 = vmatpush1.msra.mxu0 %v236
    %329 = vmatprep.subr.mxu0 0.0
    %330 = vmatpush1.msra.mxu0 %v237
    %331 = vmatprep.subr.mxu0 0.0
    %332 = vmatpush1.msra.mxu0 %v238
    %333 = vmatprep.subr.mxu0 0.0
    %334 = vmatpush1.msra.mxu0 %v239
    %335 = vmatprep.subr.mxu0 0.0
    %336 = vmatpush1.msra.mxu0 %v240
    %337 = vmatprep.subr.mxu0 0.0
    %338 = vmatpush1.msra.mxu0 %v241
    %339 = vmatprep.subr.mxu0 0.0
    %340 = vmatpush1.msra.mxu0 %v242
    %341 = vmatprep.subr.mxu0 0.0
    %342 = vmatpush1.msra.mxu0 %v243
    %343 = vmatprep.subr.mxu0 0.0
    %344 = vmatpush1.msra.mxu0 %v244
    %345 = vmatprep.subr.mxu0 0.0
    %346 = vmatpush1.msra.mxu0 %v245
    %347 = vmatprep.subr.mxu0 0.0
    %348 = vmatpush1.msra.mxu0 %v246
    %349 = vmatprep.subr.mxu0 0.0
    %350 = vmatpush1.msra.mxu0 %v247
    %351 = vmatprep.mubr.f32.mxu0 %v52
    %352 = vmatmul.mubr.f32.gmra.mrb[0].mxu0 %v51
    %v353 = vpop.f32.mrb[0].mxu0
    %v354 = vadd.f32 %v285, %v353
    %v355 = vpop.f32.mrb[0].mxu0
    %356 = vmatprep.mubr.f32.mxu0 %v56
    %357 = vmatmul.mubr.f32.gmra.mrb[0].mxu0 %v55
    %v358 = vpop.f32.mrb[0].mxu0
    %v359 = vadd.f32 %v285, %v358
    %v360 = vpop.f32.mrb[0].mxu0
    %361 = vmatprep.mubr.f32.mxu0 %v60
    %362 = vmatmul.mubr.f32.gmra.mrb[0].mxu0 %v59
    %v363 = vpop.f32.mrb[0].mxu0
    %v364 = vadd.f32 %v285, %v363
    %v365 = vpop.f32.mrb[0].mxu0
    %366 = vmatprep.mubr.f32.mxu0 %v64
    %367 = vmatmul.mubr.f32.gmra.mrb[0].mxu0 %v63
    %v368 = vpop.f32.mrb[0].mxu0
    %v369 = vadd.f32 %v285, %v368
    %v370 = vpop.f32.mrb[0].mxu0
    %371 = vmatprep.mubr.f32.mxu0 %v68
    %372 = vmatmul.mubr.f32.gmra.mrb[0].mxu0 %v67
    %v373 = vpop.f32.mrb[0].mxu0
    %v374 = vadd.f32 %v285, %v373
    %v375 = vpop.f32.mrb[0].mxu0
    %376 = vmatprep.mubr.f32.mxu0 %v72
    %377 = vmatmul.mubr.f32.gmra.mrb[0].mxu0 %v71
    %v378 = vpop.f32.mrb[0].mxu0
    %v379 = vadd.f32 %v285, %v378
    %v380 = vpop.f32.mrb[0].mxu0
    %381 = vmatprep.mubr.f32.mxu0 %v76
    %382 = vmatmul.mubr.f32.gmra.mrb[0].mxu0 %v75
    %v383 = vpop.f32.mrb[0].mxu0
    %v384 = vadd.f32 %v285, %v383
    %v385 = vpop.f32.mrb[0].mxu0
    %386 = vmatprep.mubr.f32.mxu0 %v80
    %387 = vmatmul.mubr.f32.gmra.mrb[0].mxu0 %v79
    %v388 = vpop.f32.mrb[0].mxu0
    %v389 = vadd.f32 %v285, %v388
    %v390 = vpop.f32.mrb[0].mxu0
    %391 = vmatprep.mubr.f32.mxu0 %v84
    %392 = vmatmul.mubr.f32.gmra.mrb[0].mxu0 %v83
    %v393 = vpop.f32.mrb[0].mxu0
    %v394 = vadd.f32 %v285, %v393
    %v395 = vpop.f32.mrb[0].mxu0
    %396 = vdwg.mxu0
    %397 = vmatprep.subr.mxu0 0.0
    %398 = vmatpush1.msra.mxu0 %v248
    %399 = vmatprep.subr.mxu0 0.0
    %400 = vmatpush1.msra.mxu0 %v249
    %401 = vmatprep.subr.mxu0 0.0
    %402 = vmatpush1.msra.mxu0 %v250
    %403 = vmatprep.subr.mxu0 0.0
    %404 = vmatpush1.msra.mxu0 %v251
    %405 = vmatprep.subr.mxu0 0.0
    %406 = vmatpush1.msra.mxu0 %v252
    %407 = vmatprep.subr.mxu0 0.0
    %408 = vmatpush1.msra.mxu0 %v253
    %409 = vmatprep.subr.mxu0 0.0
    %410 = vmatpush1.msra.mxu0 %v254
    %411 = vmatprep.subr.mxu0 0.0
    %412 = vmatpush1.msra.mxu0 %v255
    %413 = vmatprep.subr.mxu0 0.0
    %414 = vmatpush1.msra.mxu0 %v256
    %415 = vmatprep.subr.mxu0 0.0
    %416 = vmatpush1.msra.mxu0 %v257
    %417 = vmatprep.subr.mxu0 0.0
    %418 = vmatpush1.msra.mxu0 %v258
    %419 = vmatprep.subr.mxu0 0.0
    %420 = vmatpush1.msra.mxu0 %v259
    %421 = vmatprep.subr.mxu0 0.0
    %422 = vmatpush1.msra.mxu0 %v260
    %423 = vmatprep.subr.mxu0 0.0
    %424 = vmatpush1.msra.mxu0 %v261
    %425 = vmatprep.subr.mxu0 0.0
    %426 = vmatpush1.msra.mxu0 %v262
    %427 = vmatprep.subr.mxu0 0.0
    %428 = vmatpush1.msra.mxu0 %v263
    %429 = vmatprep.subr.mxu0 0.0
    %430 = vmatpush1.msra.mxu0 %v264
    %431 = vmatprep.subr.mxu0 0.0
    %432 = vmatpush1.msra.mxu0 %v265
    %433 = vmatprep.subr.mxu0 0.0
    %434 = vmatpush1.msra.mxu0 %v266
    %435 = vmatprep.subr.mxu0 0.0
    %436 = vmatpush1.msra.mxu0 %v267
    %437 = vmatprep.subr.mxu0 0.0
    %438 = vmatpush1.msra.mxu0 %v268
    %439 = vmatprep.subr.mxu0 0.0
    %440 = vmatpush1.msra.mxu0 %v269
    %441 = vmatprep.subr.mxu0 0.0
    %442 = vmatpush1.msra.mxu0 %v270
    %443 = vmatprep.subr.mxu0 0.0
    %444 = vmatpush1.msra.mxu0 %v271
    %445 = vmatprep.subr.mxu0 0.0
    %446 = vmatpush1.msra.mxu0 %v272
    %447 = vmatprep.subr.mxu0 0.0
    %448 = vmatpush1.msra.mxu0 %v273
    %449 = vmatprep.subr.mxu0 0.0
    %450 = vmatpush1.msra.mxu0 %v274
    %451 = vmatprep.subr.mxu0 0.0
    %452 = vmatpush1.msra.mxu0 %v275
    %453 = vmatprep.subr.mxu0 0.0
    %454 = vmatpush1.msra.mxu0 %v276
    %455 = vmatprep.subr.mxu0 0.0
    %456 = vmatpush1.msra.mxu0 %v277
    %457 = vmatprep.subr.mxu0 0.0
    %458 = vmatpush1.msra.mxu0 %v278
    %459 = vmatprep.subr.mxu0 0.0
    %460 = vmatpush1.msra.mxu0 %v279
    %461 = vmatprep.mubr.f32.mxu0 %v54
    %462 = vmatmul.mubr.f32.gmra.mrb[0].mxu0 %v53
    %v463 = vpop.f32.mrb[0].mxu0
    %v464 = vadd.f32 %v354, %v463
    %v465 = vpop.f32.mrb[0].mxu0
    %466 = vmatprep.mubr.f32.mxu0 %v58
    %467 = vmatmul.mubr.f32.gmra.mrb[0].mxu0 %v57
    %v468 = vpop.f32.mrb[0].mxu0
    %v469 = vadd.f32 %v359, %v468
    %v470 = vpop.f32.mrb[0].mxu0
    %471 = vmatprep.mubr.f32.mxu0 %v62
    %472 = vmatmul.mubr.f32.gmra.mrb[0].mxu0 %v61
    %v473 = vpop.f32.mrb[0].mxu0
    %v474 = vadd.f32 %v364, %v473
    %v475 = vpop.f32.mrb[0].mxu0
    %476 = vmatprep.mubr.f32.mxu0 %v66
    %477 = vmatmul.mubr.f32.gmra.mrb[0].mxu0 %v65
    %v478 = vpop.f32.mrb[0].mxu0
    %v479 = vadd.f32 %v369, %v478
    %v480 = vpop.f32.mrb[0].mxu0
    %481 = vmatprep.mubr.f32.mxu0 %v70
    %482 = vmatmul.mubr.f32.gmra.mrb[0].mxu0 %v69
    %v483 = vpop.f32.mrb[0].mxu0
    %v484 = vadd.f32 %v374, %v483
    %v485 = vpop.f32.mrb[0].mxu0
    %486 = vmatprep.mubr.f32.mxu0 %v74
    %487 = vmatmul.mubr.f32.gmra.mrb[0].mxu0 %v73
    %v488 = vpop.f32.mrb[0].mxu0
    %v489 = vadd.f32 %v379, %v488
    %v490 = vpop.f32.mrb[0].mxu0
    %491 = vmatprep.mubr.f32.mxu0 %v78
    %492 = vmatmul.mubr.f32.gmra.mrb[0].mxu0 %v77
    %v493 = vpop.f32.mrb[0].mxu0
    %v494 = vadd.f32 %v384, %v493
    %v495 = vpop.f32.mrb[0].mxu0
    %496 = vmatprep.mubr.f32.mxu0 %v82
    %497 = vmatmul.mubr.f32.gmra.mrb[0].mxu0 %v81
    %v498 = vpop.f32.mrb[0].mxu0
    %v499 = vadd.f32 %v389, %v498
    %v500 = vpop.f32.mrb[0].mxu0
    %501 = vmatprep.mubr.f32.mxu0 %v86
    %502 = vmatmul.mubr.f32.gmra.mrb[0].mxu0 %v85
    %v503 = vpop.f32.mrb[0].mxu0
    %v504 = vadd.f32 %v394, %v503
    %v505 = vpop.f32.mrb[0].mxu0
    %506 = vdwg.mxu0
    %v507 = vmax.f32 %v464, 0.0
    %v508 = vmax.f32 %v469, 0.0
    %v509 = vmax.f32 %v474, 0.0
    %v510 = vmax.f32 %v479, 0.0
    %v511 = vmax.f32 %v484, 0.0
    %v512 = vmax.f32 %v489, 0.0
    %v513 = vmax.f32 %v494, 0.0
    %v514 = vmax.f32 %v499, 0.0
    %v515 = vmax.f32 %v504, 0.0
    %v516 = vld [vmem:[%s3] sm:$0x1]
    %v518 = vlaneseq
    %v519 = vshrl.u32 %v518, 7
    %v520 = vsub.s32 0, %v519
    %v521 = vrot.slane %v516, %v520
    %v523 = vmul.f32 %v507, %v521
    %v524 = vmul.f32 %v508, %v521
    %v525 = vmul.f32 %v509, %v521
    %v526 = vmul.f32 %v510, %v521
    %v527 = vmul.f32 %v511, %v521
    %v528 = vmul.f32 %v512, %v521
    %v529 = vmul.f32 %v513, %v521
    %v530 = vmul.f32 %v514, %v521
    %v531 = vmul.f32 %v515, %v521
    %532 = vadd.xlane.f32.xlu0 %v523
    %v533 = vpop.xlane.xlu0 %532
    %534 = vadd.xlane.f32.xlu0 %v524
    %v535 = vpop.xlane.xlu0 %534
    %536 = vadd.xlane.f32.xlu0 %v525
    %v537 = vpop.xlane.xlu0 %536
    %538 = vadd.xlane.f32.xlu0 %v526
    %v539 = vpop.xlane.xlu0 %538
    %540 = vadd.xlane.f32.xlu0 %v527
    %v541 = vpop.xlane.xlu0 %540
    %542 = vadd.xlane.f32.xlu0 %v528
    %v543 = vpop.xlane.xlu0 %542
    %544 = vadd.xlane.f32.xlu0 %v529
    %v545 = vpop.xlane.xlu0 %544
    %546 = vadd.xlane.f32.xlu0 %v530
    %v547 = vpop.xlane.xlu0 %546
    %548 = vadd.xlane.f32.xlu0 %v531
    %v549 = vpop.xlane.xlu0 %548
    %s550 = sld [smem:[#allocation2]]
    %v551 = vstv %s550
    %v552 = vadd.f32 %v533, %v551
    %v553 = vadd.f32 %v535, %v551
    %v554 = vadd.f32 %v537, %v551
    %v555 = vadd.f32 %v539, %v551
    %v556 = vadd.f32 %v541, %v551
    %v557 = vadd.f32 %v543, %v551
    %v558 = vadd.f32 %v545, %v551
    %v559 = vadd.f32 %v547, %v551
    %v560 = vadd.f32 %v549, %v551
    %v561 = vsel %vm207, %v552, 0.0
    %v562 = vsel %vm208, %v553, 0.0
    %v563 = vsel %vm209, %v554, 0.0
    %v564 = vsel %vm210, %v555, 0.0
    %v565 = vsel %vm211, %v556, 0.0
    %v566 = vsel %vm212, %v557, 0.0
    %v567 = vsel %vm213, %v558, 0.0
    %v568 = vsel %vm214, %v559, 0.0
    %v569 = vsel %vm215, %v560, 0.0
    %vm570 = vcmask 7168
    %571 = vst.msk [vmem:[%s5] sm:$0xff] %vm570, %v561
    %572 = vst.msk [vmem:[%s5 + $0x8] sm:$0xff] %vm570, %v562
    %573 = vst.msk [vmem:[%s5 + $0x10] sm:$0xff] %vm570, %v563
    %574 = vst.msk [vmem:[%s5 + $0x18] sm:$0xff] %vm570, %v564
    %575 = vst.msk [vmem:[%s5 + $0x20] sm:$0xff] %vm570, %v565
    %576 = vst.msk [vmem:[%s5 + $0x28] sm:$0xff] %vm570, %v566
    %577 = vst.msk [vmem:[%s5 + $0x30] sm:$0xff] %vm570, %v567
    %578 = vst.msk [vmem:[%s5 + $0x38] sm:$0xff] %vm570, %v568
    %579 = vst.msk [vmem:[%s5 + $0x40] sm:$0xff] %vm570, %v569
    %v580 = vsel %vm207, 1, 0
    %v581 = vsel %vm208, 1, 0
    %v582 = vsel %vm209, 1, 0
    %v583 = vsel %vm210, 1, 0
    %v584 = vsel %vm211, 1, 0
    %v585 = vsel %vm212, 1, 0
    %v586 = vsel %vm213, 1, 0
    %v587 = vsel %vm214, 1, 0
    %v588 = vsel %vm215, 1, 0
    %v589 = vcvt.s32.f32 %v580
    %v590 = vcvt.s32.f32 %v581
    %v591 = vcvt.s32.f32 %v582
    %v592 = vcvt.s32.f32 %v583
    %v593 = vcvt.s32.f32 %v584
    %v594 = vcvt.s32.f32 %v585
    %v595 = vcvt.s32.f32 %v586
    %v596 = vcvt.s32.f32 %v587
    %v597 = vcvt.s32.f32 %v588
    %598 = vst.msk [vmem:[%s6] sm:$0xff] %vm570, %v589
    %599 = vst.msk [vmem:[%s6 + $0x8] sm:$0xff] %vm570, %v590
    %600 = vst.msk [vmem:[%s6 + $0x10] sm:$0xff] %vm570, %v591
    %601 = vst.msk [vmem:[%s6 + $0x18] sm:$0xff] %vm570, %v592
    %602 = vst.msk [vmem:[%s6 + $0x20] sm:$0xff] %vm570, %v593
    %603 = vst.msk [vmem:[%s6 + $0x28] sm:$0xff] %vm570, %v594
    %604 = vst.msk [vmem:[%s6 + $0x30] sm:$0xff] %vm570, %v595
    %605 = vst.msk [vmem:[%s6 + $0x38] sm:$0xff] %vm570, %v596
    %606 = vst.msk [vmem:[%s6 + $0x40] sm:$0xff] %vm570, %v597
    // Predicated region
    $region30: #{tpu_custom_call.1} parent=1 // pred_check
      _
    $region31: #{tpu_custom_call.1} parent=1 // pred_check_branch
      %608 = sbr.rel (0) target = $region33
    $region32: #{tpu_custom_call.1} parent=1 // pred_region
      _
    $region33: #{tpu_custom_call.1} parent=1 // pred_fallthru
      _
    // Predicated region
    $region34: #{tpu_custom_call.1} parent=1 // pred_check
      _
    $region35: #{tpu_custom_call.1} parent=1 // pred_check_branch
      %610 = sbr.rel (0) target = $region37
    $region36: #{tpu_custom_call.1} parent=1 // pred_region
      _
    $region37: #{tpu_custom_call.1} parent=1 // pred_fallthru
      _
    // Predicated region
    $region38: #{tpu_custom_call.1} parent=1 // pred_check
      _
    $region39: #{tpu_custom_call.1} parent=1 // pred_check_branch
      %612 = sbr.rel (0) target = $region41
    $region40: #{tpu_custom_call.1} parent=1 // pred_region
      _
    $region41: #{tpu_custom_call.1} parent=1 // pred_fallthru
      _
    // Predicated region
    $region42: #{tpu_custom_call.1} parent=1 // pred_check
      _
    $region43: #{tpu_custom_call.1} parent=1 // pred_check_branch
      %614 = sbr.rel (0) target = $region45
    $region44: #{tpu_custom_call.1} parent=1 // pred_region
      _
    $region45: #{tpu_custom_call.1} parent=1 // pred_fallthru
      _
    %615 = vsyncpa [#allocation4], 1
    %616 = vsyncpa [#allocation6], 1

// kernel: tpu_custom_call.1
$region0: #{tpu_custom_call.1}
  #allocation0 [shape = 'u32[]', space=smem, size = 0x4, offset = 0x4, fixed_abs, tag = 'smem constant byte address 0x4 - core index']
  #allocation1 [shape = 'u32[144,128]{1,0:T(1,128)}', space=vmem, size = 0x12000, scoped, tag = 'internal scratch']
  #allocation2 [shape = 'f32[1,1]{1,0:T(1,128)S(6)}', space=smem, size = 0x200, scoped, tag = 'scoped memory for tpu_custom_call.1']
  %s0 = inlined_call_operand.hbm [shape: f32[72,512], index: 0, kind: input, shape index: {}]
  %s1 = inlined_call_operand.hbm [shape: f32[512,128], index: 1, kind: input, shape index: {}]
  %s2 = inlined_call_operand.vmem [shape: f32[1,128], index: 2, kind: input, shape index: {}]
  %s3 = inlined_call_operand.vmem [shape: f32[1,128], index: 3, kind: input, shape index: {}]
  %s4 = inlined_call_operand.<no memory space> [shape: f32[1,1], index: 4, kind: input, shape index: {}]
  %s5 = inlined_call_operand.vmem [shape: f32[72,1], index: 5, kind: output, shape index: {0}]
  %s6 = inlined_call_operand.vmem [shape: f32[72,1], index: 6, kind: output, shape index: {1}]
  %7 = xla_tuple %s5, %s6
  %s8 = sld [smem:[#allocation0]]
  $region46: #{tpu_custom_call.1} parent=0
    _
  %s10 = ssub.s32 1, %s8
  %s11 = scalar_select 0, %s10, %s8
  %12 = sst [smem:[#allocation2]] %s4
  $region1: #{tpu_custom_call.1} parent=0
    #allocation3 [shape = 'u8[147456]{0}', space=vmem, size = 0x24000, scoped, tag = 'input window, operand 0, single buffered']
    #allocation4 [shape = 's32[1]{0}', space=sflag, size = 0x4, scoped, tag = 'scoped memory for tpu_custom_call.1']
    #allocation5 [shape = 'u8[262144]{0}', space=vmem, size = 0x40000, scoped, tag = 'input window, operand 1, single buffered']
    #allocation6 [shape = 's32[1]{0}', space=sflag, size = 0x4, scoped, tag = 'scoped memory for tpu_custom_call.1']
    %13 = vsyncpa [#allocation4], 0
    %14 = vsyncpa [#allocation6], 0
    // Predicated region
    $region2: #{tpu_custom_call.1} parent=1 // pred_check
      _
    $region3: #{tpu_custom_call.1} parent=1 // pred_check_branch
      %16 = sbr.rel (0) target = $region5
    $region4: #{tpu_custom_call.1} parent=1 // pred_region
      %s18 = ssub.s32 4608, 4608
      %19 = vsyncadd [#allocation4], %s18
      %s20 = sshll.u32 [#allocation3], 4
      %s21 = int_to_ptr.vmem [resolvable:$true] %s20
      %26 = dma.hbm_to_vmem [thread:$0]  %s0, 4608, %s21, [#allocation4], 512, 512, 32
    $region5: #{tpu_custom_call.1} parent=1 // pred_fallthru
      _
    // Predicated region
    $region6: #{tpu_custom_call.1} parent=1 // pred_check
      _
    $region7: #{tpu_custom_call.1} parent=1 // pred_check_branch
      %28 = sbr.rel (0) target = $region9
    $region8: #{tpu_custom_call.1} parent=1 // pred_region
      %s30 = ssub.s32 8192, 8192
      %31 = vsyncadd [#allocation6], %s30
      %s32 = sshll.u32 [#allocation5], 4
      %s33 = int_to_ptr.vmem [resolvable:$true] %s32
      %38 = dma.hbm_to_vmem [thread:$0]  %s1, 8192, %s33, [#allocation6], 128, 128, 8
    $region9: #{tpu_custom_call.1} parent=1 // pred_fallthru
      _
    // Predicated region
    $region10: #{tpu_custom_call.1} parent=1 // pred_check
      _
    $region11: #{tpu_custom_call.1} parent=1 // pred_check_branch
      %40 = sbr.rel (0) target = $region13
    $region12: #{tpu_custom_call.1} parent=1 // pred_region
      _
    $region13: #{tpu_custom_call.1} parent=1 // pred_fallthru
      _
    // Predicated region
    $region14: #{tpu_custom_call.1} parent=1 // pred_check
      _
    $region15: #{tpu_custom_call.1} parent=1 // pred_check_branch
      %42 = sbr.rel (0) target = $region17
    $region16: #{tpu_custom_call.1} parent=1 // pred_region
      _
    $region17: #{tpu_custom_call.1} parent=1 // pred_fallthru
      _
    // Predicated region
    $region18: #{tpu_custom_call.1} parent=1 // pred_check
      _
    $region19: #{tpu_custom_call.1} parent=1 // pred_check_branch
      %44 = sbr.rel (0) target = $region21
    $region20: #{tpu_custom_call.1} parent=1 // pred_region
      _
    $region21: #{tpu_custom_call.1} parent=1 // pred_fallthru
      _
    // Predicated region
    $region22: #{tpu_custom_call.1} parent=1 // pred_check
      _
    $region23: #{tpu_custom_call.1} parent=1 // pred_check_branch
      %46 = sbr.rel (0) target = $region25
    $region24: #{tpu_custom_call.1} parent=1 // pred_region
      %47 = dma.done [#allocation4], 4608
    $region25: #{tpu_custom_call.1} parent=1 // pred_fallthru
      _
    // Predicated region
    $region26: #{tpu_custom_call.1} parent=1 // pred_check
      _
    $region27: #{tpu_custom_call.1} parent=1 // pred_check_branch
      %49 = sbr.rel (0) target = $region29
    $region28: #{tpu_custom_call.1} parent=1 // pred_region
      %50 = dma.done [#allocation6], 8192
    $region29: #{tpu_custom_call.1} parent=1 // pred_fallthru
      _
    %v51 = vld [vmem:[#allocation3] sm:$0xff]
    %v52 = vld [vmem:[#allocation3 + $0x8] sm:$0xff]
    %v53 = vld [vmem:[#allocation3 + $0x10] sm:$0xff]
    %v54 = vld [vmem:[#allocation3 + $0x18] sm:$0xff]
    %v55 = vld [vmem:[#allocation3 + $0x20] sm:$0xff]
    %v56 = vld [vmem:[#allocation3 + $0x28] sm:$0xff]
    %v57 = vld [vmem:[#allocation3 + $0x30] sm:$0xff]
    %v58 = vld [vmem:[#allocation3 + $0x38] sm:$0xff]
    %v59 = vld [vmem:[#allocation3 + $0x40] sm:$0xff]
    %v60 = vld [vmem:[#allocation3 + $0x48] sm:$0xff]
    %v61 = vld [vmem:[#allocation3 + $0x50] sm:$0xff]
    %v62 = vld [vmem:[#allocation3 + $0x58] sm:$0xff]
    %v63 = vld [vmem:[#allocation3 + $0x60] sm:$0xff]
    %v64 = vld [vmem:[#allocation3 + $0x68] sm:$0xff]
    %v65 = vld [vmem:[#allocation3 + $0x70] sm:$0xff]
    %v66 = vld [vmem:[#allocation3 + $0x78] sm:$0xff]
    %v67 = vld [vmem:[#allocation3 + $0x80] sm:$0xff]
    %v68 = vld [vmem:[#allocation3 + $0x88] sm:$0xff]
    %v69 = vld [vmem:[#allocation3 + $0x90] sm:$0xff]
    %v70 = vld [vmem:[#allocation3 + $0x98] sm:$0xff]
    %v71 = vld [vmem:[#allocation3 + $0xa0] sm:$0xff]
    %v72 = vld [vmem:[#allocation3 + $0xa8] sm:$0xff]
    %v73 = vld [vmem:[#allocation3 + $0xb0] sm:$0xff]
    %v74 = vld [vmem:[#allocation3 + $0xb8] sm:$0xff]
    %v75 = vld [vmem:[#allocation3 + $0xc0] sm:$0xff]
    %v76 = vld [vmem:[#allocation3 + $0xc8] sm:$0xff]
    %v77 = vld [vmem:[#allocation3 + $0xd0] sm:$0xff]
    %v78 = vld [vmem:[#allocation3 + $0xd8] sm:$0xff]
    %v79 = vld [vmem:[#allocation3 + $0xe0] sm:$0xff]
    %v80 = vld [vmem:[#allocation3 + $0xe8] sm:$0xff]
    %v81 = vld [vmem:[#allocation3 + $0xf0] sm:$0xff]
    %v82 = vld [vmem:[#allocation3 + $0xf8] sm:$0xff]
    %v83 = vld [vmem:[#allocation3 + $0x100] sm:$0xff]
    %v84 = vld [vmem:[#allocation3 + $0x108] sm:$0xff]
    %v85 = vld [vmem:[#allocation3 + $0x110] sm:$0xff]
    %v86 = vld [vmem:[#allocation3 + $0x118] sm:$0xff]
    %v87 = vand.u32 2147483647, %v51
    %v88 = vand.u32 2147483647, %v52
    %v89 = vand.u32 2147483647, %v53
    %v90 = vand.u32 2147483647, %v54
    %v91 = vand.u32 2147483647, %v55
    %v92 = vand.u32 2147483647, %v56
    %v93 = vand.u32 2147483647, %v57
    %v94 = vand.u32 2147483647, %v58
    %v95 = vand.u32 2147483647, %v59
    %v96 = vand.u32 2147483647, %v60
    %v97 = vand.u32 2147483647, %v61
    %v98 = vand.u32 2147483647, %v62
    %v99 = vand.u32 2147483647, %v63
    %v100 = vand.u32 2147483647, %v64
    %v101 = vand.u32 2147483647, %v65
    %v102 = vand.u32 2147483647, %v66
    %v103 = vand.u32 2147483647, %v67
    %v104 = vand.u32 2147483647, %v68
    %v105 = vand.u32 2147483647, %v69
    %v106 = vand.u32 2147483647, %v70
    %v107 = vand.u32 2147483647, %v71
    %v108 = vand.u32 2147483647, %v72
    %v109 = vand.u32 2147483647, %v73
    %v110 = vand.u32 2147483647, %v74
    %v111 = vand.u32 2147483647, %v75
    %v112 = vand.u32 2147483647, %v76
    %v113 = vand.u32 2147483647, %v77
    %v114 = vand.u32 2147483647, %v78
    %v115 = vand.u32 2147483647, %v79
    %v116 = vand.u32 2147483647, %v80
    %v117 = vand.u32 2147483647, %v81
    %v118 = vand.u32 2147483647, %v82
    %v119 = vand.u32 2147483647, %v83
    %v120 = vand.u32 2147483647, %v84
    %v121 = vand.u32 2147483647, %v85
    %v122 = vand.u32 2147483647, %v86
    %v123 = vmax.f32 %v87, %v88
    %v124 = vmax.f32 %v123, %v89
    %v125 = vmax.f32 %v124, %v90
    %126 = vmax.xlane.f32.xlu0 %v125
    %v127 = vpop.xlane.xlu0 %126
    %v128 = vmax.f32 %v91, %v92
    %v129 = vmax.f32 %v128, %v93
    %v130 = vmax.f32 %v129, %v94
    %131 = vmax.xlane.f32.xlu0 %v130
    %v132 = vpop.xlane.xlu0 %131
    %v133 = vmax.f32 %v95, %v96
    %v134 = vmax.f32 %v133, %v97
    %v135 = vmax.f32 %v134, %v98
    %136 = vmax.xlane.f32.xlu0 %v135
    %v137 = vpop.xlane.xlu0 %136
    %v138 = vmax.f32 %v99, %v100
    %v139 = vmax.f32 %v138, %v101
    %v140 = vmax.f32 %v139, %v102
    %141 = vmax.xlane.f32.xlu0 %v140
    %v142 = vpop.xlane.xlu0 %141
    %v143 = vmax.f32 %v103, %v104
    %v144 = vmax.f32 %v143, %v105
    %v145 = vmax.f32 %v144, %v106
    %146 = vmax.xlane.f32.xlu0 %v145
    %v147 = vpop.xlane.xlu0 %146
    %v148 = vmax.f32 %v107, %v108
    %v149 = vmax.f32 %v148, %v109
    %v150 = vmax.f32 %v149, %v110
    %151 = vmax.xlane.f32.xlu0 %v150
    %v152 = vpop.xlane.xlu0 %151
    %v153 = vmax.f32 %v111, %v112
    %v154 = vmax.f32 %v153, %v113
    %v155 = vmax.f32 %v154, %v114
    %156 = vmax.xlane.f32.xlu0 %v155
    %v157 = vpop.xlane.xlu0 %156
    %v158 = vmax.f32 %v115, %v116
    %v159 = vmax.f32 %v158, %v117
    %v160 = vmax.f32 %v159, %v118
    %161 = vmax.xlane.f32.xlu0 %v160
    %v162 = vpop.xlane.xlu0 %161
    %v163 = vmax.f32 %v119, %v120
    %v164 = vmax.f32 %v163, %v121
    %v165 = vmax.f32 %v164, %v122
    %166 = vmax.xlane.f32.xlu0 %v165
    %v167 = vpop.xlane.xlu0 %166
    %vm168 = vcmp.gt.f32.partialorder %v127, 0.0
    %vm169 = vcmp.gt.f32.partialorder %v132, 0.0
    %vm170 = vcmp.gt.f32.partialorder %v137, 0.0
    %vm171 = vcmp.gt.f32.partialorder %v142, 0.0
    %vm172 = vcmp.gt.f32.partialorder %v147, 0.0
    %vm173 = vcmp.gt.f32.partialorder %v152, 0.0
    %vm174 = vcmp.gt.f32.partialorder %v157, 0.0
    %vm175 = vcmp.gt.f32.partialorder %v162, 0.0
    %vm176 = vcmp.gt.f32.partialorder %v167, 0.0
    %s177 = smul.u32 0, 72
    %v178 = vlaneseq
    %v179 = vshrl.u32 %v178, 7
    %v180 = vadd.s32 %v179, 8
    %v181 = vadd.s32 %v179, 16
    %v182 = vadd.s32 %v179, 24
    %v183 = vadd.s32 %v179, 32
    %v184 = vadd.s32 %v179, 40
    %v185 = vadd.s32 %v179, 48
    %v186 = vadd.s32 %v179, 56
    %v187 = vadd.s32 %v179, 64
    %v188 = vstv %s177
    %v189 = vadd.s32 %v188, %v179
    %v190 = vadd.s32 %v188, %v180
    %v191 = vadd.s32 %v188, %v181
    %v192 = vadd.s32 %v188, %v182
    %v193 = vadd.s32 %v188, %v183
    %v194 = vadd.s32 %v188, %v184
    %v195 = vadd.s32 %v188, %v185
    %v196 = vadd.s32 %v188, %v186
    %v197 = vadd.s32 %v188, %v187
    %vm198 = vcmp.lt.s32.totalorder %v189, 72
    %vm199 = vcmp.lt.s32.totalorder %v190, 72
    %vm200 = vcmp.lt.s32.totalorder %v191, 72
    %vm201 = vcmp.lt.s32.totalorder %v192, 72
    %vm202 = vcmp.lt.s32.totalorder %v193, 72
    %vm203 = vcmp.lt.s32.totalorder %v194, 72
    %vm204 = vcmp.lt.s32.totalorder %v195, 72
    %vm205 = vcmp.lt.s32.totalorder %v196, 72
    %vm206 = vcmp.lt.s32.totalorder %v197, 72
    %vm207 = vmand %vm168, %vm198
    %vm208 = vmand %vm169, %vm199
    %vm209 = vmand %vm170, %vm200
    %vm210 = vmand %vm171, %vm201
    %vm211 = vmand %vm172, %vm202
    %vm212 = vmand %vm173, %vm203
    %vm213 = vmand %vm174, %vm204
    %vm214 = vmand %vm175, %vm205
    %vm215 = vmand %vm176, %vm206
    %v216 = vld [vmem:[#allocation5] sm:$0xff]
    %v217 = vld [vmem:[#allocation5 + $0x8] sm:$0xff]
    %v218 = vld [vmem:[#allocation5 + $0x10] sm:$0xff]
    %v219 = vld [vmem:[#allocation5 + $0x18] sm:$0xff]
    %v220 = vld [vmem:[#allocation5 + $0x20] sm:$0xff]
    %v221 = vld [vmem:[#allocation5 + $0x28] sm:$0xff]
    %v222 = vld [vmem:[#allocation5 + $0x30] sm:$0xff]
    %v223 = vld [vmem:[#allocation5 + $0x38] sm:$0xff]
    %v224 = vld [vmem:[#allocation5 + $0x40] sm:$0xff]
    %v225 = vld [vmem:[#allocation5 + $0x48] sm:$0xff]
    %v226 = vld [vmem:[#allocation5 + $0x50] sm:$0xff]
    %v227 = vld [vmem:[#allocation5 + $0x58] sm:$0xff]
    %v228 = vld [vmem:[#allocation5 + $0x60] sm:$0xff]
    %v229 = vld [vmem:[#allocation5 + $0x68] sm:$0xff]
    %v230 = vld [vmem:[#allocation5 + $0x70] sm:$0xff]
    %v231 = vld [vmem:[#allocation5 + $0x78] sm:$0xff]
    %v232 = vld [vmem:[#allocation5 + $0x80] sm:$0xff]
    %v233 = vld [vmem:[#allocation5 + $0x88] sm:$0xff]
    %v234 = vld [vmem:[#allocation5 + $0x90] sm:$0xff]
    %v235 = vld [vmem:[#allocation5 + $0x98] sm:$0xff]
    %v236 = vld [vmem:[#allocation5 + $0xa0] sm:$0xff]
    %v237 = vld [vmem:[#allocation5 + $0xa8] sm:$0xff]
    %v238 = vld [vmem:[#allocation5 + $0xb0] sm:$0xff]
    %v239 = vld [vmem:[#allocation5 + $0xb8] sm:$0xff]
    %v240 = vld [vmem:[#allocation5 + $0xc0] sm:$0xff]
    %v241 = vld [vmem:[#allocation5 + $0xc8] sm:$0xff]
    %v242 = vld [vmem:[#allocation5 + $0xd0] sm:$0xff]
    %v243 = vld [vmem:[#allocation5 + $0xd8] sm:$0xff]
    %v244 = vld [vmem:[#allocation5 + $0xe0] sm:$0xff]
    %v245 = vld [vmem:[#allocation5 + $0xe8] sm:$0xff]
    %v246 = vld [vmem:[#allocation5 + $0xf0] sm:$0xff]
    %v247 = vld [vmem:[#allocation5 + $0xf8] sm:$0xff]
    %v248 = vld [vmem:[#allocation5 + $0x100] sm:$0xff]
    %v249 = vld [vmem:[#allocation5 + $0x108] sm:$0xff]
    %v250 = vld [vmem:[#allocation5 + $0x110] sm:$0xff]
    %v251 = vld [vmem:[#allocation5 + $0x118] sm:$0xff]
    %v252 = vld [vmem:[#allocation5 + $0x120] sm:$0xff]
    %v253 = vld [vmem:[#allocation5 + $0x128] sm:$0xff]
    %v254 = vld [vmem:[#allocation5 + $0x130] sm:$0xff]
    %v255 = vld [vmem:[#allocation5 + $0x138] sm:$0xff]
    %v256 = vld [vmem:[#allocation5 + $0x140] sm:$0xff]
    %v257 = vld [vmem:[#allocation5 + $0x148] sm:$0xff]
    %v258 = vld [vmem:[#allocation5 + $0x150] sm:$0xff]
    %v259 = vld [vmem:[#allocation5 + $0x158] sm:$0xff]
    %v260 = vld [vmem:[#allocation5 + $0x160] sm:$0xff]
    %v261 = vld [vmem:[#allocation5 + $0x168] sm:$0xff]
    %v262 = vld [vmem:[#allocation5 + $0x170] sm:$0xff]
    %v263 = vld [vmem:[#allocation5 + $0x178] sm:$0xff]
    %v264 = vld [vmem:[#allocation5 + $0x180] sm:$0xff]
    %v265 = vld [vmem:[#allocation5 + $0x188] sm:$0xff]
    %v266 = vld [vmem:[#allocation5 + $0x190] sm:$0xff]
    %v267 = vld [vmem:[#allocation5 + $0x198] sm:$0xff]
    %v268 = vld [vmem:[#allocation5 + $0x1a0] sm:$0xff]
    %v269 = vld [vmem:[#allocation5 + $0x1a8] sm:$0xff]
    %v270 = vld [vmem:[#allocation5 + $0x1b0] sm:$0xff]
    %v271 = vld [vmem:[#allocation5 + $0x1b8] sm:$0xff]
    %v272 = vld [vmem:[#allocation5 + $0x1c0] sm:$0xff]
    %v273 = vld [vmem:[#allocation5 + $0x1c8] sm:$0xff]
    %v274 = vld [vmem:[#allocation5 + $0x1d0] sm:$0xff]
    %v275 = vld [vmem:[#allocation5 + $0x1d8] sm:$0xff]
    %v276 = vld [vmem:[#allocation5 + $0x1e0] sm:$0xff]
    %v277 = vld [vmem:[#allocation5 + $0x1e8] sm:$0xff]
    %v278 = vld [vmem:[#allocation5 + $0x1f0] sm:$0xff]
    %v279 = vld [vmem:[#allocation5 + $0x1f8] sm:$0xff]
    %v280 = vld [vmem:[%s2] sm:$0x1]
    %v282 = vlaneseq
    %v283 = vshrl.u32 %v282, 7
    %v284 = vsub.s32 0, %v283
    %v285 = vrot.slane %v280, %v284
    %287 = vmatprep.subr.mxu0 0.0
    %288 = vmatpush1.msra.mxu0 %v216
    %289 = vmatprep.subr.mxu0 0.0
    %290 = vmatpush1.msra.mxu0 %v217
    %291 = vmatprep.subr.mxu0 0.0
    %292 = vmatpush1.msra.mxu0 %v218
    %293 = vmatprep.subr.mxu0 0.0
    %294 = vmatpush1.msra.mxu0 %v219
    %295 = vmatprep.subr.mxu0 0.0
    %296 = vmatpush1.msra.mxu0 %v220
    %297 = vmatprep.subr.mxu0 0.0
    %298 = vmatpush1.msra.mxu0 %v221
    %299 = vmatprep.subr.mxu0 0.0
    %300 = vmatpush1.msra.mxu0 %v222
    %301 = vmatprep.subr.mxu0 0.0
    %302 = vmatpush1.msra.mxu0 %v223
    %303 = vmatprep.subr.mxu0 0.0
    %304 = vmatpush1.msra.mxu0 %v224
    %305 = vmatprep.subr.mxu0 0.0
    %306 = vmatpush1.msra.mxu0 %v225
    %307 = vmatprep.subr.mxu0 0.0
    %308 = vmatpush1.msra.mxu0 %v226
    %309 = vmatprep.subr.mxu0 0.0
    %310 = vmatpush1.msra.mxu0 %v227
    %311 = vmatprep.subr.mxu0 0.0
    %312 = vmatpush1.msra.mxu0 %v228
    %313 = vmatprep.subr.mxu0 0.0
    %314 = vmatpush1.msra.mxu0 %v229
    %315 = vmatprep.subr.mxu0 0.0
    %316 = vmatpush1.msra.mxu0 %v230
    %317 = vmatprep.subr.mxu0 0.0
    %318 = vmatpush1.msra.mxu0 %v231
    %319 = vmatprep.subr.mxu0 0.0
    %320 = vmatpush1.msra.mxu0 %v232
    %321 = vmatprep.subr.mxu0 0.0
    %322 = vmatpush1.msra.mxu0 %v233
    %323 = vmatprep.subr.mxu0 0.0
    %324 = vmatpush1.msra.mxu0 %v234
    %325 = vmatprep.subr.mxu0 0.0
    %326 = vmatpush1.msra.mxu0 %v235
    %327 = vmatprep.subr.mxu0 0.0
    %328 = vmatpush1.msra.mxu0 %v236
    %329 = vmatprep.subr.mxu0 0.0
    %330 = vmatpush1.msra.mxu0 %v237
    %331 = vmatprep.subr.mxu0 0.0
    %332 = vmatpush1.msra.mxu0 %v238
    %333 = vmatprep.subr.mxu0 0.0
    %334 = vmatpush1.msra.mxu0 %v239
    %335 = vmatprep.subr.mxu0 0.0
    %336 = vmatpush1.msra.mxu0 %v240
    %337 = vmatprep.subr.mxu0 0.0
    %338 = vmatpush1.msra.mxu0 %v241
    %339 = vmatprep.subr.mxu0 0.0
    %340 = vmatpush1.msra.mxu0 %v242
    %341 = vmatprep.subr.mxu0 0.0
    %342 = vmatpush1.msra.mxu0 %v243
    %343 = vmatprep.subr.mxu0 0.0
    %344 = vmatpush1.msra.mxu0 %v244
    %345 = vmatprep.subr.mxu0 0.0
    %346 = vmatpush1.msra.mxu0 %v245
    %347 = vmatprep.subr.mxu0 0.0
    %348 = vmatpush1.msra.mxu0 %v246
    %349 = vmatprep.subr.mxu0 0.0
    %350 = vmatpush1.msra.mxu0 %v247
    %351 = vmatprep.mubr.f32.mxu0 %v52
    %352 = vmatmul.mubr.f32.gmra.mrb[0].mxu0 %v51
    %v353 = vpop.f32.mrb[0].mxu0
    %v354 = vadd.f32 %v285, %v353
    %v355 = vpop.f32.mrb[0].mxu0
    %356 = vmatprep.mubr.f32.mxu0 %v56
    %357 = vmatmul.mubr.f32.gmra.mrb[0].mxu0 %v55
    %v358 = vpop.f32.mrb[0].mxu0
    %v359 = vadd.f32 %v285, %v358
    %v360 = vpop.f32.mrb[0].mxu0
    %361 = vmatprep.mubr.f32.mxu0 %v60
    %362 = vmatmul.mubr.f32.gmra.mrb[0].mxu0 %v59
    %v363 = vpop.f32.mrb[0].mxu0
    %v364 = vadd.f32 %v285, %v363
    %v365 = vpop.f32.mrb[0].mxu0
    %366 = vmatprep.mubr.f32.mxu0 %v64
    %367 = vmatmul.mubr.f32.gmra.mrb[0].mxu0 %v63
    %v368 = vpop.f32.mrb[0].mxu0
    %v369 = vadd.f32 %v285, %v368
    %v370 = vpop.f32.mrb[0].mxu0
    %371 = vmatprep.mubr.f32.mxu0 %v68
    %372 = vmatmul.mubr.f32.gmra.mrb[0].mxu0 %v67
    %v373 = vpop.f32.mrb[0].mxu0
    %v374 = vadd.f32 %v285, %v373
    %v375 = vpop.f32.mrb[0].mxu0
    %376 = vmatprep.mubr.f32.mxu0 %v72
    %377 = vmatmul.mubr.f32.gmra.mrb[0].mxu0 %v71
    %v378 = vpop.f32.mrb[0].mxu0
    %v379 = vadd.f32 %v285, %v378
    %v380 = vpop.f32.mrb[0].mxu0
    %381 = vmatprep.mubr.f32.mxu0 %v76
    %382 = vmatmul.mubr.f32.gmra.mrb[0].mxu0 %v75
    %v383 = vpop.f32.mrb[0].mxu0
    %v384 = vadd.f32 %v285, %v383
    %v385 = vpop.f32.mrb[0].mxu0
    %386 = vmatprep.mubr.f32.mxu0 %v80
    %387 = vmatmul.mubr.f32.gmra.mrb[0].mxu0 %v79
    %v388 = vpop.f32.mrb[0].mxu0
    %v389 = vadd.f32 %v285, %v388
    %v390 = vpop.f32.mrb[0].mxu0
    %391 = vmatprep.mubr.f32.mxu0 %v84
    %392 = vmatmul.mubr.f32.gmra.mrb[0].mxu0 %v83
    %v393 = vpop.f32.mrb[0].mxu0
    %v394 = vadd.f32 %v285, %v393
    %v395 = vpop.f32.mrb[0].mxu0
    %396 = vdwg.mxu0
    %397 = vmatprep.subr.mxu0 0.0
    %398 = vmatpush1.msra.mxu0 %v248
    %399 = vmatprep.subr.mxu0 0.0
    %400 = vmatpush1.msra.mxu0 %v249
    %401 = vmatprep.subr.mxu0 0.0
    %402 = vmatpush1.msra.mxu0 %v250
    %403 = vmatprep.subr.mxu0 0.0
    %404 = vmatpush1.msra.mxu0 %v251
    %405 = vmatprep.subr.mxu0 0.0
    %406 = vmatpush1.msra.mxu0 %v252
    %407 = vmatprep.subr.mxu0 0.0
    %408 = vmatpush1.msra.mxu0 %v253
    %409 = vmatprep.subr.mxu0 0.0
    %410 = vmatpush1.msra.mxu0 %v254
    %411 = vmatprep.subr.mxu0 0.0
    %412 = vmatpush1.msra.mxu0 %v255
    %413 = vmatprep.subr.mxu0 0.0
    %414 = vmatpush1.msra.mxu0 %v256
    %415 = vmatprep.subr.mxu0 0.0
    %416 = vmatpush1.msra.mxu0 %v257
    %417 = vmatprep.subr.mxu0 0.0
    %418 = vmatpush1.msra.mxu0 %v258
    %419 = vmatprep.subr.mxu0 0.0
    %420 = vmatpush1.msra.mxu0 %v259
    %421 = vmatprep.subr.mxu0 0.0
    %422 = vmatpush1.msra.mxu0 %v260
    %423 = vmatprep.subr.mxu0 0.0
    %424 = vmatpush1.msra.mxu0 %v261
    %425 = vmatprep.subr.mxu0 0.0
    %426 = vmatpush1.msra.mxu0 %v262
    %427 = vmatprep.subr.mxu0 0.0
    %428 = vmatpush1.msra.mxu0 %v263
    %429 = vmatprep.subr.mxu0 0.0
    %430 = vmatpush1.msra.mxu0 %v264
    %431 = vmatprep.subr.mxu0 0.0
    %432 = vmatpush1.msra.mxu0 %v265
    %433 = vmatprep.subr.mxu0 0.0
    %434 = vmatpush1.msra.mxu0 %v266
    %435 = vmatprep.subr.mxu0 0.0
    %436 = vmatpush1.msra.mxu0 %v267
    %437 = vmatprep.subr.mxu0 0.0
    %438 = vmatpush1.msra.mxu0 %v268
    %439 = vmatprep.subr.mxu0 0.0
    %440 = vmatpush1.msra.mxu0 %v269
    %441 = vmatprep.subr.mxu0 0.0
    %442 = vmatpush1.msra.mxu0 %v270
    %443 = vmatprep.subr.mxu0 0.0
    %444 = vmatpush1.msra.mxu0 %v271
    %445 = vmatprep.subr.mxu0 0.0
    %446 = vmatpush1.msra.mxu0 %v272
    %447 = vmatprep.subr.mxu0 0.0
    %448 = vmatpush1.msra.mxu0 %v273
    %449 = vmatprep.subr.mxu0 0.0
    %450 = vmatpush1.msra.mxu0 %v274
    %451 = vmatprep.subr.mxu0 0.0
    %452 = vmatpush1.msra.mxu0 %v275
    %453 = vmatprep.subr.mxu0 0.0
    %454 = vmatpush1.msra.mxu0 %v276
    %455 = vmatprep.subr.mxu0 0.0
    %456 = vmatpush1.msra.mxu0 %v277
    %457 = vmatprep.subr.mxu0 0.0
    %458 = vmatpush1.msra.mxu0 %v278
    %459 = vmatprep.subr.mxu0 0.0
    %460 = vmatpush1.msra.mxu0 %v279
    %461 = vmatprep.mubr.f32.mxu0 %v54
    %462 = vmatmul.mubr.f32.gmra.mrb[0].mxu0 %v53
    %v463 = vpop.f32.mrb[0].mxu0
    %v464 = vadd.f32 %v354, %v463
    %v465 = vpop.f32.mrb[0].mxu0
    %466 = vmatprep.mubr.f32.mxu0 %v58
    %467 = vmatmul.mubr.f32.gmra.mrb[0].mxu0 %v57
    %v468 = vpop.f32.mrb[0].mxu0
    %v469 = vadd.f32 %v359, %v468
    %v470 = vpop.f32.mrb[0].mxu0
    %471 = vmatprep.mubr.f32.mxu0 %v62
    %472 = vmatmul.mubr.f32.gmra.mrb[0].mxu0 %v61
    %v473 = vpop.f32.mrb[0].mxu0
    %v474 = vadd.f32 %v364, %v473
    %v475 = vpop.f32.mrb[0].mxu0
    %476 = vmatprep.mubr.f32.mxu0 %v66
    %477 = vmatmul.mubr.f32.gmra.mrb[0].mxu0 %v65
    %v478 = vpop.f32.mrb[0].mxu0
    %v479 = vadd.f32 %v369, %v478
    %v480 = vpop.f32.mrb[0].mxu0
    %481 = vmatprep.mubr.f32.mxu0 %v70
    %482 = vmatmul.mubr.f32.gmra.mrb[0].mxu0 %v69
    %v483 = vpop.f32.mrb[0].mxu0
    %v484 = vadd.f32 %v374, %v483
    %v485 = vpop.f32.mrb[0].mxu0
    %486 = vmatprep.mubr.f32.mxu0 %v74
    %487 = vmatmul.mubr.f32.gmra.mrb[0].mxu0 %v73
    %v488 = vpop.f32.mrb[0].mxu0
    %v489 = vadd.f32 %v379, %v488
    %v490 = vpop.f32.mrb[0].mxu0
    %491 = vmatprep.mubr.f32.mxu0 %v78
    %492 = vmatmul.mubr.f32.gmra.mrb[0].mxu0 %v77
    %v493 = vpop.f32.mrb[0].mxu0
    %v494 = vadd.f32 %v384, %v493
    %v495 = vpop.f32.mrb[0].mxu0
    %496 = vmatprep.mubr.f32.mxu0 %v82
    %497 = vmatmul.mubr.f32.gmra.mrb[0].mxu0 %v81
    %v498 = vpop.f32.mrb[0].mxu0
    %v499 = vadd.f32 %v389, %v498
    %v500 = vpop.f32.mrb[0].mxu0
    %501 = vmatprep.mubr.f32.mxu0 %v86
    %502 = vmatmul.mubr.f32.gmra.mrb[0].mxu0 %v85
    %v503 = vpop.f32.mrb[0].mxu0
    %v504 = vadd.f32 %v394, %v503
    %v505 = vpop.f32.mrb[0].mxu0
    %506 = vdwg.mxu0
    %v507 = vmax.f32 %v464, 0.0
    %v508 = vmax.f32 %v469, 0.0
    %v509 = vmax.f32 %v474, 0.0
    %v510 = vmax.f32 %v479, 0.0
    %v511 = vmax.f32 %v484, 0.0
    %v512 = vmax.f32 %v489, 0.0
    %v513 = vmax.f32 %v494, 0.0
    %v514 = vmax.f32 %v499, 0.0
    %v515 = vmax.f32 %v504, 0.0
    %v516 = vld [vmem:[%s3] sm:$0x1]
    %v518 = vlaneseq
    %v519 = vshrl.u32 %v518, 7
    %v520 = vsub.s32 0, %v519
    %v521 = vrot.slane %v516, %v520
    %v523 = vmul.f32 %v507, %v521
    %v524 = vmul.f32 %v508, %v521
    %v525 = vmul.f32 %v509, %v521
    %v526 = vmul.f32 %v510, %v521
    %v527 = vmul.f32 %v511, %v521
    %v528 = vmul.f32 %v512, %v521
    %v529 = vmul.f32 %v513, %v521
    %v530 = vmul.f32 %v514, %v521
    %v531 = vmul.f32 %v515, %v521
    %532 = vadd.xlane.f32.xlu0 %v523
    %v533 = vpop.xlane.xlu0 %532
    %534 = vadd.xlane.f32.xlu0 %v524
    %v535 = vpop.xlane.xlu0 %534
    %536 = vadd.xlane.f32.xlu0 %v525
    %v537 = vpop.xlane.xlu0 %536
    %538 = vadd.xlane.f32.xlu0 %v526
    %v539 = vpop.xlane.xlu0 %538
    %540 = vadd.xlane.f32.xlu0 %v527
    %v541 = vpop.xlane.xlu0 %540
    %542 = vadd.xlane.f32.xlu0 %v528
    %v543 = vpop.xlane.xlu0 %542
    %544 = vadd.xlane.f32.xlu0 %v529
    %v545 = vpop.xlane.xlu0 %544
    %546 = vadd.xlane.f32.xlu0 %v530
    %v547 = vpop.xlane.xlu0 %546
    %548 = vadd.xlane.f32.xlu0 %v531
    %v549 = vpop.xlane.xlu0 %548
    %s550 = sld [smem:[#allocation2]]
    %v551 = vstv %s550
    %v552 = vadd.f32 %v533, %v551
    %v553 = vadd.f32 %v535, %v551
    %v554 = vadd.f32 %v537, %v551
    %v555 = vadd.f32 %v539, %v551
    %v556 = vadd.f32 %v541, %v551
    %v557 = vadd.f32 %v543, %v551
    %v558 = vadd.f32 %v545, %v551
    %v559 = vadd.f32 %v547, %v551
    %v560 = vadd.f32 %v549, %v551
    %v561 = vsel %vm207, %v552, 0.0
    %v562 = vsel %vm208, %v553, 0.0
    %v563 = vsel %vm209, %v554, 0.0
    %v564 = vsel %vm210, %v555, 0.0
    %v565 = vsel %vm211, %v556, 0.0
    %v566 = vsel %vm212, %v557, 0.0
    %v567 = vsel %vm213, %v558, 0.0
    %v568 = vsel %vm214, %v559, 0.0
    %v569 = vsel %vm215, %v560, 0.0
    %vm570 = vcmask 7168
    %571 = vst.msk [vmem:[%s5] sm:$0xff] %vm570, %v561
    %572 = vst.msk [vmem:[%s5 + $0x8] sm:$0xff] %vm570, %v562
    %573 = vst.msk [vmem:[%s5 + $0x10] sm:$0xff] %vm570, %v563
    %574 = vst.msk [vmem:[%s5 + $0x18] sm:$0xff] %vm570, %v564
    %575 = vst.msk [vmem:[%s5 + $0x20] sm:$0xff] %vm570, %v565
    %576 = vst.msk [vmem:[%s5 + $0x28] sm:$0xff] %vm570, %v566
    %577 = vst.msk [vmem:[%s5 + $0x30] sm:$0xff] %vm570, %v567
    %578 = vst.msk [vmem:[%s5 + $0x38] sm:$0xff] %vm570, %v568
    %579 = vst.msk [vmem:[%s5 + $0x40] sm:$0xff] %vm570, %v569
    %v580 = vsel %vm207, 1, 0
    %v581 = vsel %vm208, 1, 0
    %v582 = vsel %vm209, 1, 0
    %v583 = vsel %vm210, 1, 0
    %v584 = vsel %vm211, 1, 0
    %v585 = vsel %vm212, 1, 0
    %v586 = vsel %vm213, 1, 0
    %v587 = vsel %vm214, 1, 0
    %v588 = vsel %vm215, 1, 0
    %v589 = vcvt.s32.f32 %v580
    %v590 = vcvt.s32.f32 %v581
    %v591 = vcvt.s32.f32 %v582
    %v592 = vcvt.s32.f32 %v583
    %v593 = vcvt.s32.f32 %v584
    %v594 = vcvt.s32.f32 %v585
    %v595 = vcvt.s32.f32 %v586
    %v596 = vcvt.s32.f32 %v587
    %v597 = vcvt.s32.f32 %v588
    %598 = vst.msk [vmem:[%s6] sm:$0xff] %vm570, %v589
    %599 = vst.msk [vmem:[%s6 + $0x8] sm:$0xff] %vm570, %v590
    %600 = vst.msk [vmem:[%s6 + $0x10] sm:$0xff] %vm570, %v591
    %601 = vst.msk [vmem:[%s6 + $0x18] sm:$0xff] %vm570, %v592
    %602 = vst.msk [vmem:[%s6 + $0x20] sm:$0xff] %vm570, %v593
    %603 = vst.msk [vmem:[%s6 + $0x28] sm:$0xff] %vm570, %v594
    %604 = vst.msk [vmem:[%s6 + $0x30] sm:$0xff] %vm570, %v595
    %605 = vst.msk [vmem:[%s6 + $0x38] sm:$0xff] %vm570, %v596
    %606 = vst.msk [vmem:[%s6 + $0x40] sm:$0xff] %vm570, %v597
    // Predicated region
    $region30: #{tpu_custom_call.1} parent=1 // pred_check
      _
    $region31: #{tpu_custom_call.1} parent=1 // pred_check_branch
      %608 = sbr.rel (0) target = $region33
    $region32: #{tpu_custom_call.1} parent=1 // pred_region
      _
    $region33: #{tpu_custom_call.1} parent=1 // pred_fallthru
      _
    // Predicated region
    $region34: #{tpu_custom_call.1} parent=1 // pred_check
      _
    $region35: #{tpu_custom_call.1} parent=1 // pred_check_branch
      %610 = sbr.rel (0) target = $region37
    $region36: #{tpu_custom_call.1} parent=1 // pred_region
      _
    $region37: #{tpu_custom_call.1} parent=1 // pred_fallthru
      _
    // Predicated region
    $region38: #{tpu_custom_call.1} parent=1 // pred_check
      _
    $region39: #{tpu_custom_call.1} parent=1 // pred_check_branch
      %612 = sbr.rel (0) target = $region41
    $region40: #{tpu_custom_call.1} parent=1 // pred_region
      _
    $region41: #{tpu_custom_call.1} parent=1 // pred_fallthru
      _
    // Predicated region
    $region42: #{tpu_custom_call.1} parent=1 // pred_check
      _
    $region43: #{tpu_custom_call.1} parent=1 // pred_check_branch
      %614 = sbr.rel (0) target = $region45
    $region44: #{tpu_custom_call.1} parent=1 // pred_region
      _
    $region45: #{tpu_custom_call.1} parent=1 // pred_fallthru
      _
    %615 = vsyncpa [#allocation4], 1
    %616 = vsyncpa [#allocation6], 1

</llo_original>
